<compile_context>
chip_gen: v7x
topology: tpu7x:2x2x1
jax: 0.10.0
libtpu: 0.0.40
codegen_flags: <defaults>
</compile_context>

<pallas_src>
import jax
import jax.numpy as jnp
from jax import lax
from jax.experimental import pallas as pl
from jax.experimental.pallas import tpu as pltpu


def _make_encoding_kernel(n_total, tile_n, ragged):
    """Builds the kernel body; n_total / tile_n / ragged are trace-time constants."""

    def kernel(x_ref, cm2_ref, c_ref, csq_ref, s2_ref, e_ref, acc_ref, asum_ref):
        n_idx = pl.program_id(1)

        @pl.when(n_idx == 0)
        def _():
            acc_ref[...] = jnp.zeros_like(acc_ref)
            asum_ref[...] = jnp.zeros_like(asum_ref)

        x = x_ref[0]                                   # (D, TN), native dtype
        if ragged:
            pos = n_idx * tile_n + lax.broadcasted_iota(
                jnp.int32, (1, tile_n), 1)             # (1, TN) global token ids
            valid = pos < n_total
            x = jnp.where(valid, x, jnp.zeros_like(x))
        x_f = x.astype(jnp.float32)                    # widen only in VMEM

        # Scaled squared distances in (K, TN) layout (tokens on lanes):
        #   sl[k,n] = s2[k]*||x_n||^2 - 2*(s2[k]*c_k) . x_n + s2[k]*||c_k||^2
        # cm2 = -2 * s2 * c is precomputed, so the middle term is one MXU matmul.
        xc = lax.dot_general(                          # (K, TN)   MXU
            cm2_ref[...], x_f,
            (((1,), (0,)), ((), ())),
            precision=lax.Precision.HIGHEST,
            preferred_element_type=jnp.float32)
        xsq = jnp.sum(x_f * x_f, axis=0, keepdims=True)            # (1, TN)
        sl = s2_ref[...] * xsq + xc + csq_ref[...]                 # (K, TN)

        # Softmax over the codeword axis K (sublanes -> cheap XLU reduce).
        m = jnp.max(sl, axis=0, keepdims=True)                     # (1, TN)
        p = jnp.exp(sl - m)                                        # (K, TN)
        denom = jnp.sum(p, axis=0, keepdims=True)                  # (1, TN)
        # Exact divide (previous approx reciprocal caused a tolerance failure);
        # only TN divides, then a broadcast multiply over K.
        a = p * (1.0 / denom)                                      # (K, TN)
        if ragged:
            a = jnp.where(valid, a, 0.0)

        # e[k,d] = sum_n a[k,n]*(x[d,n] - c[k,d])
        #        = (a contracted with x over n) - (sum_n a[k,n]) * c[k,d]
        # The "- asum * c" correction is applied only in the finalize step.
        acc_ref[...] += lax.dot_general(                            # (K, D)  MXU
            a, x_f,
            (((1,), (1,)), ((), ())),
            precision=lax.Precision.HIGHEST,
            preferred_element_type=jnp.float32)
        asum_ref[...] += jnp.sum(a, axis=1, keepdims=True)          # (K, 1)

        @pl.when(n_idx == pl.num_programs(1) - 1)
        def _():
            e_ref[0] = (acc_ref[...] - asum_ref[...] * c_ref[...]).astype(e_ref.dtype)

    return kernel


def encoding_forward(x, codewords, scale, *, tile_n=512, vmem_limit_mb=32):
    """Encoding layer forward. x: (B, D, H, W) or (B, D, N). Returns (B, K, D) f32."""
    if x.ndim == 4:
        b, d = x.shape[0], x.shape[1]
        x_bdn = x.reshape(b, d, -1)        # (B, D, N): free reshape, no HBM transpose
    elif x.ndim == 3:
        x_bdn = x                           # already (B, D, N) channel-major
    else:
        raise RuntimeError("Encoding Layer unknown input dims!")

    B, D, N = x_bdn.shape
    K = codewords.shape[0]
    assert codewords.shape == (K, D)

    # Tokens live on the lane axis: keep tile_n a multiple of 128 unless we take
    # the whole (small) N in one block.
    if tile_n >= N:
        tile_n = N
    else:
        tile_n = min(max(128, (tile_n // 128) * 128), N)
    ragged = (N % tile_n) != 0
    n_tiles = pl.cdiv(N, tile_n)

    # Loop-invariant precompute (hoisted out of the grid loop).
    f32 = jnp.float32
    s2 = (scale.astype(f32) * scale.astype(f32)).reshape(K, 1)      # (K, 1)  scale^2
    c = codewords.astype(f32)                                       # (K, D)
    cm2 = -2.0 * s2 * c                                             # (K, D)  -2*scale^2*c
    csq = s2 * jnp.sum(c * c, axis=-1, keepdims=True)               # (K, 1)  scale^2*||c||^2

    kernel = _make_encoding_kernel(N, tile_n, ragged)

    return pl.pallas_call(
        kernel,
        out_shape=jax.ShapeDtypeStruct((B, K, D), jnp.float32),
        grid_spec=pltpu.PrefetchScalarGridSpec(
            num_scalar_prefetch=0,
            grid=(B, n_tiles),
            in_specs=[
                pl.BlockSpec((1, D, tile_n), lambda b, n: (b, 0, n)),  # x tile (native layout)
                pl.BlockSpec((K, D), lambda b, n: (0, 0)),             # -2 * scale^2 * codewords
                pl.BlockSpec((K, D), lambda b, n: (0, 0)),             # codewords
                pl.BlockSpec((K, 1), lambda b, n: (0, 0)),             # scale^2 * ||c||^2
                pl.BlockSpec((K, 1), lambda b, n: (0, 0)),             # scale^2
            ],
            out_specs=pl.BlockSpec((1, K, D), lambda b, n: (b, 0, 0)),  # resident over n
            scratch_shapes=[
                pltpu.VMEM((K, D), jnp.float32),   # accumulated a @ x^T
                pltpu.VMEM((K, 1), jnp.float32),   # accumulated sum_n a
            ],
        ),
        compiler_params=pltpu.CompilerParams(
            dimension_semantics=("parallel", "arbitrary"),
            vmem_limit_bytes=vmem_limit_mb * 1024 * 1024),
    )(x_bdn, cm2, c, csq, s2)


def encoding_reference(x, codewords, scale):
    """Pure-JAX reference matching the PyTorch Encoding.forward exactly."""
    b, d = x.shape[0], x.shape[1]
    xt = jnp.transpose(x.reshape(b, d, -1), (0, 2, 1))              # (B, N, D)
    diff = xt[:, :, None, :] - codewords[None, None, :, :]           # (B, N, K, D)
    sl = jnp.sum((scale[None, None, :, None] * diff) ** 2, axis=3)   # (B, N, K)
    a = jax.nn.softmax(sl, axis=2)                                   # (B, N, K)
    e = jnp.sum(a[:, :, :, None] * diff, axis=1)                     # (B, K, D)
    return e


if __name__ == "__main__":
    # Small shapes consistent with the module (EncModule uses ncodes=32).
    B, D, H, W = 2, 64, 32, 32     # x: (B, D, H, W), N = H*W = 1024 tokens
    K = 32                         # number of codewords

    key = jax.random.PRNGKey(0)
    kx, kc, ks = jax.random.split(key, 3)

    x = jax.random.normal(kx, (B, D, H, W), dtype=jnp.float32)

    std1 = 1.0 / (K * D) ** 0.5
    codewords = jax.random.uniform(kc, (K, D), minval=-std1, maxval=std1,
                                   dtype=jnp.float32)
    scale = jax.random.uniform(ks, (K,), minval=-1.0, maxval=0.0,
                               dtype=jnp.float32)

    e = encoding_forward(x, codewords, scale, tile_n=256)   # 4 reduction steps / batch
    e = jax.block_until_ready(e)

    e_ref = jax.block_until_ready(encoding_reference(x, codewords, scale))
    assert e.shape == (B, K, D)
    # Tolerance allows for the ||x||^2 - 2x.c + ||c||^2 expansion vs direct diff.
    assert jnp.allclose(e, e_ref, atol=2e-3, rtol=2e-3), "mismatch vs reference"

    print("KERNEL_OK")
</pallas_src>

<mosaic_0001>
module attributes {stable_mosaic.version = 11 : i64} {
  func.func @kernel(%arg0: i32, %arg1: i32, %arg2: memref<1x64x256xf32, #tpu.memory_space<vmem>>, %arg3: memref<32x64xf32, #tpu.memory_space<vmem>>, %arg4: memref<32x64xf32, #tpu.memory_space<vmem>>, %arg5: memref<32x1xf32, #tpu.memory_space<vmem>>, %arg6: memref<32x1xf32, #tpu.memory_space<vmem>>, %arg7: memref<1x32x64xf32, #tpu.memory_space<vmem>>, %arg8: memref<32x64xf32, #tpu.memory_space<vmem>>, %arg9: memref<32x1xf32, #tpu.memory_space<vmem>>) attributes {dimension_semantics = [#tpu.dimension_semantics<parallel>, #tpu.dimension_semantics<arbitrary>], iteration_bounds = array<i64: 2, 4>, scalar_prefetch = 0 : i64, scratch_operands = 2 : i64, tpu.core_type = #tpu.core_type<tc>, window_params = [{transform_indices = @transform_0, window_bounds = array<i64: 1, 64, 256>}, {pipeline_mode = #tpu.pipeline_mode<synchronous>, transform_indices = @transform_1, window_bounds = array<i64: 32, 64>}, {pipeline_mode = #tpu.pipeline_mode<synchronous>, transform_indices = @transform_2, window_bounds = array<i64: 32, 64>}, {pipeline_mode = #tpu.pipeline_mode<synchronous>, transform_indices = @transform_3, window_bounds = array<i64: 32, 1>}, {pipeline_mode = #tpu.pipeline_mode<synchronous>, transform_indices = @transform_4, window_bounds = array<i64: 32, 1>}, {transform_indices = @transform_5, window_bounds = array<i64: 1, 32, 64>}]} {
    %c0_i32 = arith.constant 0 : i32
    %0 = arith.cmpi eq, %arg1, %c0_i32 : i32
    %1 = arith.extui %0 : i1 to i32
    %c0_i32_0 = arith.constant 0 : i32
    %2 = arith.cmpi ne, %1, %c0_i32_0 : i32
    scf.if %2 {
      %cst_24 = arith.constant 0.000000e+00 : f32
      %41 = vector.broadcast %cst_24 : f32 to vector<32x64xf32>
      %c0_25 = arith.constant 0 : index
      %c0_26 = arith.constant 0 : index
      %42 = vector.load %arg8[%c0_25, %c0_26] : memref<32x64xf32, #tpu.memory_space<vmem>>, vector<32x64xf32>
      tpu.vector_store %arg8[%c0_25, %c0_26], %41 {strides = array<i32>} : memref<32x64xf32, #tpu.memory_space<vmem>>, vector<32x64xf32>,
      %cst_27 = arith.constant 0.000000e+00 : f32
      %43 = vector.broadcast %cst_27 : f32 to vector<32x1xf32>
      %c0_28 = arith.constant 0 : index
      %c0_29 = arith.constant 0 : index
      %44 = vector.load %arg9[%c0_28, %c0_29] : memref<32x1xf32, #tpu.memory_space<vmem>>, vector<32x1xf32>
      tpu.vector_store %arg9[%c0_28, %c0_29], %43 {strides = array<i32>} : memref<32x1xf32, #tpu.memory_space<vmem>>, vector<32x1xf32>,
    } else {
    }
    %c0 = arith.constant 0 : index
    %c0_1 = arith.constant 0 : index
    %c0_2 = arith.constant 0 : index
    %3 = vector.load %arg2[%c0, %c0_1, %c0_2] : memref<1x64x256xf32, #tpu.memory_space<vmem>>, vector<1x64x256xf32>
    %4 = vector.shape_cast %3 : vector<1x64x256xf32> to vector<64x256xf32>
    %c0_3 = arith.constant 0 : index
    %c0_4 = arith.constant 0 : index
    %5 = vector.load %arg3[%c0_3, %c0_4] : memref<32x64xf32, #tpu.memory_space<vmem>>, vector<32x64xf32>
    %cst = arith.constant dense<0.000000e+00> : vector<32x256xf32>
    %6 = tpu.matmul %5, %4, %cst {dimension_numbers = #tpu.dot_dimension_numbers<[1], [0], [0], [1], [0, 0, 1, 1], [], []>, precision = #tpu.contract_precision<fp32>} : vector<32x64xf32>, vector<64x256xf32>, vector<32x256xf32> -> vector<32x256xf32>
    %7 = arith.mulf %4, %4 : vector<64x256xf32>
    %cst_5 = arith.constant dense<0.000000e+00> : vector<256xf32>
    %8 = vector.multi_reduction <add>, %7, %cst_5 [0] : vector<64x256xf32> to vector<256xf32>
    %9 = vector.shape_cast %8 : vector<256xf32> to vector<1x256xf32>
    %c0_6 = arith.constant 0 : index
    %c0_7 = arith.constant 0 : index
    %10 = vector.load %arg6[%c0_6, %c0_7] : memref<32x1xf32, #tpu.memory_space<vmem>>, vector<32x1xf32>
    %11 = vector.broadcast %10 : vector<32x1xf32> to vector<32x256xf32>
    %12 = vector.broadcast %9 : vector<1x256xf32> to vector<32x256xf32>
    %13 = arith.mulf %11, %12 : vector<32x256xf32>
    %14 = arith.addf %13, %6 : vector<32x256xf32>
    %c0_8 = arith.constant 0 : index
    %c0_9 = arith.constant 0 : index
    %15 = vector.load %arg5[%c0_8, %c0_9] : memref<32x1xf32, #tpu.memory_space<vmem>>, vector<32x1xf32>
    %16 = vector.broadcast %15 : vector<32x1xf32> to vector<32x256xf32>
    %17 = arith.addf %14, %16 : vector<32x256xf32>
    %cst_10 = arith.constant dense<0xFF800000> : vector<256xf32>
    %18 = vector.multi_reduction <maximumf>, %17, %cst_10 [0] : vector<32x256xf32> to vector<256xf32>
    %19 = vector.shape_cast %18 : vector<256xf32> to vector<1x256xf32>
    %20 = vector.broadcast %19 : vector<1x256xf32> to vector<32x256xf32>
    %21 = arith.subf %17, %20 : vector<32x256xf32>
    %22 = math.exp %21 : vector<32x256xf32>
    %cst_11 = arith.constant dense<0.000000e+00> : vector<256xf32>
    %23 = vector.multi_reduction <add>, %22, %cst_11 [0] : vector<32x256xf32> to vector<256xf32>
    %24 = vector.shape_cast %23 : vector<256xf32> to vector<1x256xf32>
    %cst_12 = arith.constant 1.000000e+00 : f32
    %25 = vector.broadcast %cst_12 : f32 to vector<1x256xf32>
    %26 = arith.divf %25, %24 : vector<1x256xf32>
    %27 = vector.broadcast %26 : vector<1x256xf32> to vector<32x256xf32>
    %28 = arith.mulf %22, %27 : vector<32x256xf32>
    %c0_13 = arith.constant 0 : index
    %c0_14 = arith.constant 0 : index
    %29 = vector.load %arg8[%c0_13, %c0_14] : memref<32x64xf32, #tpu.memory_space<vmem>>, vector<32x64xf32>
    %cst_15 = arith.constant dense<0.000000e+00> : vector<32x64xf32>
    %30 = tpu.matmul %28, %4, %cst_15 {dimension_numbers = #tpu.dot_dimension_numbers<[1], [1], [0], [0], [0, 0, 1, 0], [], []>, precision = #tpu.contract_precision<fp32>} : vector<32x256xf32>, vector<64x256xf32>, vector<32x64xf32> -> vector<32x64xf32>
    %31 = arith.addf %29, %30 : vector<32x64xf32>
    %c0_16 = arith.constant 0 : index
    %c0_17 = arith.constant 0 : index
    %32 = vector.load %arg8[%c0_16, %c0_17] : memref<32x64xf32, #tpu.memory_space<vmem>>, vector<32x64xf32>
    tpu.vector_store %arg8[%c0_16, %c0_17], %31 {strides = array<i32>} : memref<32x64xf32, #tpu.memory_space<vmem>>, vector<32x64xf32>,
    %c0_18 = arith.constant 0 : index
    %c0_19 = arith.constant 0 : index
    %33 = vector.load %arg9[%c0_18, %c0_19] : memref<32x1xf32, #tpu.memory_space<vmem>>, vector<32x1xf32>
    %cst_20 = arith.constant dense<0.000000e+00> : vector<32xf32>
    %34 = vector.multi_reduction <add>, %28, %cst_20 [1] : vector<32x256xf32> to vector<32xf32>
    %35 = vector.shape_cast %34 : vector<32xf32> to vector<32x1xf32>
    %36 = arith.addf %33, %35 : vector<32x1xf32>
    %c0_21 = arith.constant 0 : index
    %c0_22 = arith.constant 0 : index
    %37 = vector.load %arg9[%c0_21, %c0_22] : memref<32x1xf32, #tpu.memory_space<vmem>>, vector<32x1xf32>
    tpu.vector_store %arg9[%c0_21, %c0_22], %36 {strides = array<i32>} : memref<32x1xf32, #tpu.memory_space<vmem>>, vector<32x1xf32>,
    %c3_i32 = arith.constant 3 : i32
    %38 = arith.cmpi eq, %arg1, %c3_i32 : i32
    %39 = arith.extui %38 : i1 to i32
    %c0_i32_23 = arith.constant 0 : i32
    %40 = arith.cmpi ne, %39, %c0_i32_23 : i32
    scf.if %40 {
      %c0_24 = arith.constant 0 : index
      %c0_25 = arith.constant 0 : index
      %41 = vector.load %arg8[%c0_24, %c0_25] : memref<32x64xf32, #tpu.memory_space<vmem>>, vector<32x64xf32>
      %c0_26 = arith.constant 0 : index
      %c0_27 = arith.constant 0 : index
      %42 = vector.load %arg9[%c0_26, %c0_27] : memref<32x1xf32, #tpu.memory_space<vmem>>, vector<32x1xf32>
      %c0_28 = arith.constant 0 : index
      %c0_29 = arith.constant 0 : index
      %43 = vector.load %arg4[%c0_28, %c0_29] : memref<32x64xf32, #tpu.memory_space<vmem>>, vector<32x64xf32>
      %44 = vector.broadcast %42 : vector<32x1xf32> to vector<32x64xf32>
      %45 = arith.mulf %44, %43 : vector<32x64xf32>
      %46 = arith.subf %41, %45 : vector<32x64xf32>
      %c0_30 = arith.constant 0 : index
      %c0_31 = arith.constant 0 : index
      %c0_32 = arith.constant 0 : index
      %47 = vector.load %arg7[%c0_30, %c0_31, %c0_32] : memref<1x32x64xf32, #tpu.memory_space<vmem>>, vector<1x32x64xf32>
      %48 = vector.shape_cast %47 : vector<1x32x64xf32> to vector<32x64xf32>
      %49 = vector.shape_cast %46 : vector<32x64xf32> to vector<1x32x64xf32>
      tpu.vector_store %arg7[%c0_30, %c0_31, %c0_32], %49 {strides = array<i32>} : memref<1x32x64xf32, #tpu.memory_space<vmem>>, vector<1x32x64xf32>,
    } else {
    }
    return
  }
  func.func @transform_0(%arg0: i32, %arg1: i32) -> (i32, i32, i32) {
    %c0_i32 = arith.constant 0 : i32
    %c0_i32_0 = arith.constant 0 : i32
    return %arg0, %c0_i32, %arg1 : i32, i32, i32
  }
  func.func @transform_1(%arg0: i32, %arg1: i32) -> (i32, i32) {
    %c0_i32 = arith.constant 0 : i32
    %c0_i32_0 = arith.constant 0 : i32
    %c0_i32_1 = arith.constant 0 : i32
    return %c0_i32, %c0_i32_0 : i32, i32
  }
  func.func @transform_2(%arg0: i32, %arg1: i32) -> (i32, i32) {
    %c0_i32 = arith.constant 0 : i32
    %c0_i32_0 = arith.constant 0 : i32
    %c0_i32_1 = arith.constant 0 : i32
    return %c0_i32, %c0_i32_0 : i32, i32
  }
  func.func @transform_3(%arg0: i32, %arg1: i32) -> (i32, i32) {
    %c0_i32 = arith.constant 0 : i32
    %c0_i32_0 = arith.constant 0 : i32
    %c0_i32_1 = arith.constant 0 : i32
    return %c0_i32, %c0_i32_0 : i32, i32
  }
  func.func @transform_4(%arg0: i32, %arg1: i32) -> (i32, i32) {
    %c0_i32 = arith.constant 0 : i32
    %c0_i32_0 = arith.constant 0 : i32
    %c0_i32_1 = arith.constant 0 : i32
    return %c0_i32, %c0_i32_0 : i32, i32
  }
  func.func @transform_5(%arg0: i32, %arg1: i32) -> (i32, i32, i32) {
    %c0_i32 = arith.constant 0 : i32
    %c0_i32_0 = arith.constant 0 : i32
    %c0_i32_1 = arith.constant 0 : i32
    return %arg0, %c0_i32, %c0_i32_0 : i32, i32, i32
  }
}

</mosaic_0001>

<llo_original>
// kernel: tpu_custom_call.1
$region0: #{tpu_custom_call.1}
  #allocation0 [shape = 'u32[]', space=smem, size = 0x4, offset = 0x4, fixed_abs, tag = 'smem constant byte address 0x4 - core index']
  #allocation1 [shape = 'u32[144,128]{1,0:T(1,128)}', space=vmem, size = 0x12000, scoped, tag = 'internal scratch']
  #allocation2 [shape = 'f32[32,64]{1,0:T(8,128)}', space=vmem, size = 0x4000, scoped, tag = 'scratch operand']
  #allocation3 [shape = 'f32[32,1]{1,0:T(8,128)}', space=vmem, size = 0x4000, scoped, tag = 'scratch operand']
  %s0 = inlined_call_operand.hbm [shape: f32[2,64,1024], index: 0, kind: input, shape index: {}]
  %s1 = inlined_call_operand.vmem [shape: f32[32,64], index: 1, kind: input, shape index: {}]
  %s2 = inlined_call_operand.vmem [shape: f32[32,64], index: 2, kind: input, shape index: {}]
  %s3 = inlined_call_operand.vmem [shape: f32[32,1], index: 3, kind: input, shape index: {}]
  %s4 = inlined_call_operand.vmem [shape: f32[32,1], index: 4, kind: input, shape index: {}]
  %s5 = inlined_call_operand.hbm [shape: f32[2,32,64], index: 5, kind: output, shape index: {}]
  %s6 = sld [smem:[#allocation0]]
  $region65: #{tpu_custom_call.1} parent=0
    _
  %s8 = ssub.s32 1, %s6
  %s9 = scalar_select 0, %s8, %s6
  $region1: #{tpu_custom_call.1} parent=0
    #allocation4 [shape = 'u8[131072]{0}', space=vmem, size = 0x20000, scoped, tag = 'input window, operand 0']
    #allocation5 [shape = 's32[2]{0}', space=sflag, size = 0x8, scoped, tag = 'scoped memory for tpu_custom_call.1']
    #allocation6 [shape = 's32[2]{0}', space=sflag, size = 0x8, scoped, tag = 'scoped memory for tpu_custom_call.1']
    #allocation7 [shape = 'u8[32768]{0}', space=vmem, size = 0x8000, scoped, tag = 'output window, operand 0']
    %10 = vsyncpa [#allocation5], 0
    %s11 = scalar_lea.sflag [#allocation5], 1
    %12 = vsyncpa %s11, 0
    %13 = vsyncpa [#allocation6], 0
    %s14 = scalar_lea.sflag [#allocation6], 1
    %15 = vsyncpa %s14, 0
    loop: start=0, step=1, limit=10
    $region2: #{tpu_custom_call.1} parent=1 // loop_pre_header
      _
    $region3: #{tpu_custom_call.1} parent=1 // loop_header
      %s17 = sphi 0, %s21
      %p18 = scmp.ge.s32.totalorder %s17, 10
      %s24 = sphi 0, %s36
      %s25 = sphi 0, %s32
      %s26 = sphi 0, %s24
      %s27 = sphi 0, %s25
      %s28 = sphi 0, %s26
      %s29 = sphi 0, %s27
      %s41 = sphi 0, %s43
      %s44 = sphi 0, %s41
      %s45 = sphi 0, %s44
      %s61 = sphi 0, %s45
      %s65 = sphi 0, %s65
      %s67 = sphi 0, %s65
      %s68 = sphi 0, %s67
      %s82 = sphi 0, %s68
      %s86 = sphi 0, %s86
      %s88 = sphi 0, %s86
      %s89 = sphi 0, %s88
      %s103 = sphi 0, %s89
      %s107 = sphi 0, %s107
      %s109 = sphi 0, %s107
      %s110 = sphi 0, %s109
      %s124 = sphi 0, %s110
      %s128 = sphi 0, %s128
      %s130 = sphi 0, %s128
      %s131 = sphi 0, %s130
      %s145 = sphi 0, %s131
      %s151 = sphi 0, %s153
      %s154 = sphi 0, %s151
      %s155 = sphi 0, %s154
      %s171 = sphi 0, %s155
    $region4: #{tpu_custom_call.1} parent=1 // loop_header_branch
      %20 = sbr.rel (%p18) target = $region8
    $region5: #{tpu_custom_call.1} parent=1 // loop_body
      %s22 = ssub.s32 %s17, 1
      %s23 = ssub.s32 %s17, 2
      %s30 = sadd.s32 1, %s25
      %p31 = scmp.ge.s32.totalorder %s30, 4
      %s32 = scalar_select %p31, 0, %s30
      %s33 = sadd.s32 1, %s24
      %s34 = scalar_select %p31, %s33, %s24
      %p35 = scmp.ge.s32.totalorder %s34, 2
      %s36 = scalar_select %p35, 0, %s34
      %s37 = ssub.s32 %s24, %s36
      %s38 = ssub.s32 %s25, %s32
      %s39 = sor.u32 %s37, %s38
      %p40 = scmp.eq.s32.totalorder %s39, 0
      %s42 = sadd.s32 %s41, 1
      %s43 = scalar_select %p40, %s41, %s42
      %p46 = pneg %p40
      %p47 = scmp.eq.s32.totalorder %s17, 7
      %p48 = por %p46, %p47
      %p49 = scmp.ne.s32.totalorder %s41, %s44
      %p50 = scmp.eq.s32.totalorder %s17, 0
      %p51 = por %p49, %p50
      %p52 = scmp.ne.s32.totalorder %s41, %s44
      %p53 = scmp.eq.s32.totalorder %s22, 7
      %p54 = por %p52, %p53
      %p55 = scmp.ne.s32.totalorder %s44, %s45
      %p56 = scmp.eq.s32.totalorder %s22, 0
      %p57 = por %p55, %p56
      %p58 = scmp.ne.s32.totalorder %s44, %s45
      %p59 = scmp.eq.s32.totalorder %s23, 7
      %p60 = por %p58, %p59
      %p62 = scmp.ne.s32.totalorder %s45, %s61
      %p63 = scmp.eq.s32.totalorder %s23, 0
      %p64 = por %p62, %p63
      %s66 = sadd.s32 %s65, 1
      %p69 = scmp.eq.s32.totalorder %s17, 7
      %p70 = scmp.ne.s32.totalorder %s65, %s67
      %p71 = scmp.eq.s32.totalorder %s17, 0
      %p72 = por %p70, %p71
      %p73 = scmp.ne.s32.totalorder %s65, %s67
      %p74 = scmp.eq.s32.totalorder %s22, 7
      %p75 = por %p73, %p74
      %p76 = scmp.ne.s32.totalorder %s67, %s68
      %p77 = scmp.eq.s32.totalorder %s22, 0
      %p78 = por %p76, %p77
      %p79 = scmp.ne.s32.totalorder %s67, %s68
      %p80 = scmp.eq.s32.totalorder %s23, 7
      %p81 = por %p79, %p80
      %p83 = scmp.ne.s32.totalorder %s68, %s82
      %p84 = scmp.eq.s32.totalorder %s23, 0
      %p85 = por %p83, %p84
      %s87 = sadd.s32 %s86, 1
      %p90 = scmp.eq.s32.totalorder %s17, 7
      %p91 = scmp.ne.s32.totalorder %s86, %s88
      %p92 = scmp.eq.s32.totalorder %s17, 0
      %p93 = por %p91, %p92
      %p94 = scmp.ne.s32.totalorder %s86, %s88
      %p95 = scmp.eq.s32.totalorder %s22, 7
      %p96 = por %p94, %p95
      %p97 = scmp.ne.s32.totalorder %s88, %s89
      %p98 = scmp.eq.s32.totalorder %s22, 0
      %p99 = por %p97, %p98
      %p100 = scmp.ne.s32.totalorder %s88, %s89
      %p101 = scmp.eq.s32.totalorder %s23, 7
      %p102 = por %p100, %p101
      %p104 = scmp.ne.s32.totalorder %s89, %s103
      %p105 = scmp.eq.s32.totalorder %s23, 0
      %p106 = por %p104, %p105
      %s108 = sadd.s32 %s107, 1
      %p111 = scmp.eq.s32.totalorder %s17, 7
      %p112 = scmp.ne.s32.totalorder %s107, %s109
      %p113 = scmp.eq.s32.totalorder %s17, 0
      %p114 = por %p112, %p113
      %p115 = scmp.ne.s32.totalorder %s107, %s109
      %p116 = scmp.eq.s32.totalorder %s22, 7
      %p117 = por %p115, %p116
      %p118 = scmp.ne.s32.totalorder %s109, %s110
      %p119 = scmp.eq.s32.totalorder %s22, 0
      %p120 = por %p118, %p119
      %p121 = scmp.ne.s32.totalorder %s109, %s110
      %p122 = scmp.eq.s32.totalorder %s23, 7
      %p123 = por %p121, %p122
      %p125 = scmp.ne.s32.totalorder %s110, %s124
      %p126 = scmp.eq.s32.totalorder %s23, 0
      %p127 = por %p125, %p126
      %s129 = sadd.s32 %s128, 1
      %p132 = scmp.eq.s32.totalorder %s17, 7
      %p133 = scmp.ne.s32.totalorder %s128, %s130
      %p134 = scmp.eq.s32.totalorder %s17, 0
      %p135 = por %p133, %p134
      %p136 = scmp.ne.s32.totalorder %s128, %s130
      %p137 = scmp.eq.s32.totalorder %s22, 7
      %p138 = por %p136, %p137
      %p139 = scmp.ne.s32.totalorder %s130, %s131
      %p140 = scmp.eq.s32.totalorder %s22, 0
      %p141 = por %p139, %p140
      %p142 = scmp.ne.s32.totalorder %s130, %s131
      %p143 = scmp.eq.s32.totalorder %s23, 7
      %p144 = por %p142, %p143
      %p146 = scmp.ne.s32.totalorder %s131, %s145
      %p147 = scmp.eq.s32.totalorder %s23, 0
      %p148 = por %p146, %p147
      %s149 = ssub.s32 %s24, %s36
      %p150 = scmp.eq.s32.totalorder %s149, 0
      %s152 = sadd.s32 %s151, 1
      %s153 = scalar_select %p150, %s151, %s152
      %p156 = pneg %p150
      %p157 = scmp.eq.s32.totalorder %s17, 7
      %p158 = por %p156, %p157
      %p159 = scmp.ne.s32.totalorder %s151, %s154
      %p160 = scmp.eq.s32.totalorder %s17, 0
      %p161 = por %p159, %p160
      %p162 = scmp.ne.s32.totalorder %s151, %s154
      %p163 = scmp.eq.s32.totalorder %s22, 7
      %p164 = por %p162, %p163
      %p165 = scmp.ne.s32.totalorder %s154, %s155
      %p166 = scmp.eq.s32.totalorder %s22, 0
      %p167 = por %p165, %p166
      %p168 = scmp.ne.s32.totalorder %s154, %s155
      %p169 = scmp.eq.s32.totalorder %s23, 7
      %p170 = por %p168, %p169
      %p172 = scmp.ne.s32.totalorder %s155, %s171
      %p173 = scmp.eq.s32.totalorder %s23, 0
      %p174 = por %p172, %p173
      %p175 = scmp.le.s32.totalorder 1, %s17
      %p176 = scmp.lt.s32.totalorder %s17, 9
      %p177 = pnand %p175, %p176
      %p178 = pneg %p177
      // Predicated region
      $region9: #{tpu_custom_call.1} parent=5 // pred_check
        _
      $region10: #{tpu_custom_call.1} parent=5 // pred_check_branch
        %180 = sbr.rel (%p177) target = $region12
      $region11: #{tpu_custom_call.1} parent=5 // pred_region
        %s181 = ssub.s32 %s17, 1
        // Predicated region
        $region13: #{tpu_custom_call.1} parent=11 // pred_check
          %p182 = pneg %p78
        $region14: #{tpu_custom_call.1} parent=11 // pred_check_branch
          %184 = sbr.rel (%p182) target = $region16
        $region15: #{tpu_custom_call.1} parent=11 // pred_region
          _
        $region16: #{tpu_custom_call.1} parent=11 // pred_fallthru
          _
        // Predicated region
        $region17: #{tpu_custom_call.1} parent=11 // pred_check
          %p185 = pneg %p99
        $region18: #{tpu_custom_call.1} parent=11 // pred_check_branch
          %187 = sbr.rel (%p185) target = $region20
        $region19: #{tpu_custom_call.1} parent=11 // pred_region
          _
        $region20: #{tpu_custom_call.1} parent=11 // pred_fallthru
          _
        // Predicated region
        $region21: #{tpu_custom_call.1} parent=11 // pred_check
          %p188 = pneg %p120
        $region22: #{tpu_custom_call.1} parent=11 // pred_check_branch
          %190 = sbr.rel (%p188) target = $region24
        $region23: #{tpu_custom_call.1} parent=11 // pred_region
          _
        $region24: #{tpu_custom_call.1} parent=11 // pred_fallthru
          _
        // Predicated region
        $region25: #{tpu_custom_call.1} parent=11 // pred_check
          %p191 = pneg %p141
        $region26: #{tpu_custom_call.1} parent=11 // pred_check_branch
          %193 = sbr.rel (%p191) target = $region28
        $region27: #{tpu_custom_call.1} parent=11 // pred_region
          _
        $region28: #{tpu_custom_call.1} parent=11 // pred_fallthru
          _
      $region12: #{tpu_custom_call.1} parent=5 // pred_fallthru
        _
      %p194 = scmp.lt.s32.totalorder %s17, 8
      // Predicated region
      $region29: #{tpu_custom_call.1} parent=5 // pred_check
        %p195 = pneg %p194
      $region30: #{tpu_custom_call.1} parent=5 // pred_check_branch
        %197 = sbr.rel (%p195) target = $region32
      $region31: #{tpu_custom_call.1} parent=5 // pred_region
        // Predicated region
        $region33: #{tpu_custom_call.1} parent=31 // pred_check
          %p198 = pneg %p51
        $region34: #{tpu_custom_call.1} parent=31 // pred_check_branch
          %200 = sbr.rel (%p198) target = $region36
        $region35: #{tpu_custom_call.1} parent=31 // pred_region
          %s201 = sand.u32 %s41, 1
          %s202 = scalar_lea.sflag [#allocation5], %s201
          %s203 = sand.u32 %s41, 1
          %s204 = smul.addr %s203, 128
          %s205 = scalar_lea.vmem [#allocation4], %s204
          %s206 = smul.u32 2, %s25
          %s208 = ssub.s32 2048, 2048
          %209 = vsyncadd %s202, %s208
          %s210 = smul.addr %s24, 64
          %s211 = sadd.s32 %s206, %s210
          %s212 = smul.addr %s211, 128
          %s213 = scalar_lea.hbm %s0, %s212
          %s214 = sshll.u32 %s205, 4
          %s215 = int_to_ptr.vmem [resolvable:$true] %s214
          %220 = dma.hbm_to_vmem [thread:$0]  %s213, 2048, %s215, %s202, 1024, 256, 16
        $region36: #{tpu_custom_call.1} parent=31 // pred_fallthru
          _
      $region32: #{tpu_custom_call.1} parent=5 // pred_fallthru
        _
      %p221 = scmp.le.s32.totalorder 1, %s17
      %p222 = scmp.lt.s32.totalorder %s17, 9
      %p223 = pnand %p221, %p222
      %p224 = pneg %p223
      // Predicated region
      $region37: #{tpu_custom_call.1} parent=5 // pred_check
        _
      $region38: #{tpu_custom_call.1} parent=5 // pred_check_branch
        %226 = sbr.rel (%p223) target = $region40
      $region39: #{tpu_custom_call.1} parent=5 // pred_region
        %s227 = ssub.s32 %s17, 1
        %s228 = sand.u32 %s44, 1
        %s229 = scalar_lea.sflag [#allocation5], %s228
        %s230 = sand.u32 %s44, 1
        %s231 = smul.addr %s230, 128
        %s232 = scalar_lea.vmem [#allocation4], %s231
        // Predicated region
        $region41: #{tpu_custom_call.1} parent=39 // pred_check
          %p233 = pneg %p57
        $region42: #{tpu_custom_call.1} parent=39 // pred_check_branch
          %235 = sbr.rel (%p233) target = $region44
        $region43: #{tpu_custom_call.1} parent=39 // pred_region
          %236 = dma.done %s229, 2048
        $region44: #{tpu_custom_call.1} parent=39 // pred_fallthru
          _
        %s237 = sand.u32 %s44, 1
        %s238 = scalar_lea.sflag [#allocation5], %s237
        %s239 = sand.u32 %s44, 1
        %s240 = smul.addr %s239, 128
        %s241 = scalar_lea.vmem [#allocation4], %s240
        %p242 = pneg %p57
        %p243 = pneg %p54
        %p244 = pneg %p78
        %p245 = pneg %p75
        %p246 = pneg %p99
        %p247 = pneg %p96
        %p248 = pneg %p120
        %p249 = pneg %p117
        %p250 = pneg %p141
        %p251 = pneg %p138
        %p252 = pneg %p167
        %p253 = pneg %p164
        %s254 = sand.u32 %s154, 1
        %s255 = scalar_lea.sflag [#allocation6], %s254
        %s256 = sand.u32 %s154, 1
        %s257 = smul.addr %s256, 32
        %s258 = scalar_lea.vmem [#allocation7], %s257
        %s259 = smul.u32 2, %s27
        %p260 = scmp.eq.s32.totalorder %s27, 0
        // Predicated region
        $region45: #{tpu_custom_call.1} parent=39 // pred_check
          %p261 = pneg %p260
        $region46: #{tpu_custom_call.1} parent=39 // pred_check_branch
          %263 = sbr.rel (%p261) target = $region48
        $region47: #{tpu_custom_call.1} parent=39 // pred_region
          %vm264 = vcmask 523264
          %265 = vst.msk [vmem:[#allocation2] sm:$0xff] %vm264, 0.0
          %266 = vst.msk [vmem:[#allocation2 + $0x8] sm:$0xff] %vm264, 0.0
          %267 = vst.msk [vmem:[#allocation2 + $0x10] sm:$0xff] %vm264, 0.0
          %268 = vst.msk [vmem:[#allocation2 + $0x18] sm:$0xff] %vm264, 0.0
          %vm269 = vcmask 7168
          %270 = vst.msk [vmem:[#allocation3] sm:$0xff] %vm269, 0.0
          %271 = vst.msk [vmem:[#allocation3 + $0x8] sm:$0xff] %vm269, 0.0
          %272 = vst.msk [vmem:[#allocation3 + $0x10] sm:$0xff] %vm269, 0.0
          %273 = vst.msk [vmem:[#allocation3 + $0x18] sm:$0xff] %vm269, 0.0
        $region48: #{tpu_custom_call.1} parent=39 // pred_fallthru
          _
        %v274 = vld [vmem:[%s232] sm:$0xff]
        %v275 = vld [vmem:[%s232 + $0x8] sm:$0xff]
        %v276 = vld [vmem:[%s232 + $0x10] sm:$0xff]
        %v277 = vld [vmem:[%s232 + $0x18] sm:$0xff]
        %v278 = vld [vmem:[%s232 + $0x20] sm:$0xff]
        %v279 = vld [vmem:[%s232 + $0x28] sm:$0xff]
        %v280 = vld [vmem:[%s232 + $0x30] sm:$0xff]
        %v281 = vld [vmem:[%s232 + $0x38] sm:$0xff]
        %v282 = vld [vmem:[%s232 + $0x40] sm:$0xff]
        %v283 = vld [vmem:[%s232 + $0x48] sm:$0xff]
        %v284 = vld [vmem:[%s232 + $0x50] sm:$0xff]
        %v285 = vld [vmem:[%s232 + $0x58] sm:$0xff]
        %v286 = vld [vmem:[%s232 + $0x60] sm:$0xff]
        %v287 = vld [vmem:[%s232 + $0x68] sm:$0xff]
        %v288 = vld [vmem:[%s232 + $0x70] sm:$0xff]
        %v289 = vld [vmem:[%s232 + $0x78] sm:$0xff]
        %v290 = vld [vmem:[%s1] sm:$0xff]
        %v291 = vld [vmem:[%s1 + $0x8] sm:$0xff]
        %v292 = vld [vmem:[%s1 + $0x10] sm:$0xff]
        %v293 = vld [vmem:[%s1 + $0x18] sm:$0xff]
        %vm294 = vcmask 523264
        %v296 = vsel %vm294, %v290, 0
        %v299 = vsel %vm294, %v291, 0
        %v302 = vsel %vm294, %v292, 0
        %v305 = vsel %vm294, %v293, 0
        %v307 = vand.u32 %v275, 4294901760
        %308 = vmatprep.subr.mxu0 %v307
        %v309 = vand.u32 %v274, 4294901760
        %310 = vmatpush1.msra.mxu0 %v309
        %v311 = vand.u32 %v277, 4294901760
        %312 = vmatprep.subr.mxu0 %v311
        %v313 = vand.u32 %v276, 4294901760
        %314 = vmatpush1.msra.mxu0 %v313
        %v315 = vand.u32 %v279, 4294901760
        %316 = vmatprep.subr.mxu0 %v315
        %v317 = vand.u32 %v278, 4294901760
        %318 = vmatpush1.msra.mxu0 %v317
        %v319 = vand.u32 %v281, 4294901760
        %320 = vmatprep.subr.mxu0 %v319
        %v321 = vand.u32 %v280, 4294901760
        %322 = vmatpush1.msra.mxu0 %v321
        %v323 = vand.u32 %v283, 4294901760
        %324 = vmatprep.subr.mxu0 %v323
        %v325 = vand.u32 %v282, 4294901760
        %326 = vmatpush1.msra.mxu0 %v325
        %v327 = vand.u32 %v285, 4294901760
        %328 = vmatprep.subr.mxu0 %v327
        %v329 = vand.u32 %v284, 4294901760
        %330 = vmatpush1.msra.mxu0 %v329
        %v331 = vand.u32 %v287, 4294901760
        %332 = vmatprep.subr.mxu0 %v331
        %v333 = vand.u32 %v286, 4294901760
        %334 = vmatpush1.msra.mxu0 %v333
        %v335 = vand.u32 %v289, 4294901760
        %336 = vmatprep.subr.mxu0 %v335
        %v337 = vand.u32 %v288, 4294901760
        %338 = vmatpush1.msra.mxu0 %v337
        %339 = vmatprep.subr.mxu0 0.0
        %340 = vmatpush1.msra.mxu0 0.0
        %341 = vmatprep.subr.mxu0 0.0
        %342 = vmatpush1.msra.mxu0 0.0
        %343 = vmatprep.subr.mxu0 0.0
        %344 = vmatpush1.msra.mxu0 0.0
        %345 = vmatprep.subr.mxu0 0.0
        %346 = vmatpush1.msra.mxu0 0.0
        %347 = vmatprep.subr.mxu0 0.0
        %348 = vmatpush1.msra.mxu0 0.0
        %349 = vmatprep.subr.mxu0 0.0
        %350 = vmatpush1.msra.mxu0 0.0
        %351 = vmatprep.subr.mxu0 0.0
        %352 = vmatpush1.msra.mxu0 0.0
        %353 = vmatprep.subr.mxu0 0.0
        %354 = vmatpush1.msra.mxu0 0.0
        %355 = vmatprep.subr.mxu0 0.0
        %356 = vmatpush1.msra.mxu0 0.0
        %357 = vmatprep.subr.mxu0 0.0
        %358 = vmatpush1.msra.mxu0 0.0
        %359 = vmatprep.subr.mxu0 0.0
        %360 = vmatpush1.msra.mxu0 0.0
        %361 = vmatprep.subr.mxu0 0.0
        %362 = vmatpush1.msra.mxu0 0.0
        %363 = vmatprep.subr.mxu0 0.0
        %364 = vmatpush1.msra.mxu0 0.0
        %365 = vmatprep.subr.mxu0 0.0
        %366 = vmatpush1.msra.mxu0 0.0
        %367 = vmatprep.subr.mxu0 0.0
        %368 = vmatpush1.msra.mxu0 0.0
        %369 = vmatprep.subr.mxu0 0.0
        %370 = vmatpush1.msra.mxu0 0.0
        %371 = vmatprep.subr.mxu0 0.0
        %372 = vmatpush1.msra.mxu0 0.0
        %373 = vmatprep.subr.mxu0 0.0
        %374 = vmatpush1.msra.mxu0 0.0
        %375 = vmatprep.subr.mxu0 0.0
        %376 = vmatpush1.msra.mxu0 0.0
        %377 = vmatprep.subr.mxu0 0.0
        %378 = vmatpush1.msra.mxu0 0.0
        %379 = vmatprep.subr.mxu0 0.0
        %380 = vmatpush1.msra.mxu0 0.0
        %381 = vmatprep.subr.mxu0 0.0
        %382 = vmatpush1.msra.mxu0 0.0
        %383 = vmatprep.subr.mxu0 0.0
        %384 = vmatpush1.msra.mxu0 0.0
        %385 = vmatprep.subr.mxu0 0.0
        %386 = vmatpush1.msra.mxu0 0.0
        %387 = vmatprep.mubr.f32.mxu0 0.0
        %v388 = vand.u32 %v296, 4294901760
        %v389 = vsub.f32 %v296, %v388
        %v390 = vand.u32 %v389, 4294901760
        %v391 = vsub.f32 %v389, %v390
        %v392 = vand.u32 %v391, 4294901760
        %393 = vmatmul.mubr.f32.gmra.mrb[0].mxu0 %v392
        %v394 = vpop.f32.mrb[0].mxu0
        %v395 = vadd.f32 0.0, %v394
        %v396 = vpop.f32.mrb[0].mxu0
        %v397 = vadd.f32 0.0, %v396
        %398 = vmatprep.mubr.f32.mxu0 0.0
        %v399 = vand.u32 %v299, 4294901760
        %v400 = vsub.f32 %v299, %v399
        %v401 = vand.u32 %v400, 4294901760
        %v402 = vsub.f32 %v400, %v401
        %v403 = vand.u32 %v402, 4294901760
        %404 = vmatmul.mubr.f32.gmra.mrb[0].mxu0 %v403
        %v405 = vpop.f32.mrb[0].mxu0
        %v406 = vadd.f32 0.0, %v405
        %v407 = vpop.f32.mrb[0].mxu0
        %v408 = vadd.f32 0.0, %v407
        %409 = vmatprep.mubr.f32.mxu0 0.0
        %v410 = vand.u32 %v302, 4294901760
        %v411 = vsub.f32 %v302, %v410
        %v412 = vand.u32 %v411, 4294901760
        %v413 = vsub.f32 %v411, %v412
        %v414 = vand.u32 %v413, 4294901760
        %415 = vmatmul.mubr.f32.gmra.mrb[0].mxu0 %v414
        %v416 = vpop.f32.mrb[0].mxu0
        %v417 = vadd.f32 0.0, %v416
        %v418 = vpop.f32.mrb[0].mxu0
        %v419 = vadd.f32 0.0, %v418
        %420 = vmatprep.mubr.f32.mxu0 0.0
        %v421 = vand.u32 %v305, 4294901760
        %v422 = vsub.f32 %v305, %v421
        %v423 = vand.u32 %v422, 4294901760
        %v424 = vsub.f32 %v422, %v423
        %v425 = vand.u32 %v424, 4294901760
        %426 = vmatmul.mubr.f32.gmra.mrb[0].mxu0 %v425
        %v427 = vpop.f32.mrb[0].mxu0
        %v428 = vadd.f32 0.0, %v427
        %v429 = vpop.f32.mrb[0].mxu0
        %v430 = vadd.f32 0.0, %v429
        %431 = vdwg.mxu0
        %v432 = vand.u32 %v275, 4294901760
        %v433 = vsub.f32 %v275, %v432
        %v434 = vand.u32 %v433, 4294901760
        %v435 = vsub.f32 %v433, %v434
        %v436 = vand.u32 %v435, 4294901760
        %437 = vmatprep.subr.mxu0 %v436
        %v438 = vand.u32 %v274, 4294901760
        %v439 = vsub.f32 %v274, %v438
        %v440 = vand.u32 %v439, 4294901760
        %v441 = vsub.f32 %v439, %v440
        %v442 = vand.u32 %v441, 4294901760
        %443 = vmatpush1.msra.mxu0 %v442
        %v444 = vand.u32 %v277, 4294901760
        %v445 = vsub.f32 %v277, %v444
        %v446 = vand.u32 %v445, 4294901760
        %v447 = vsub.f32 %v445, %v446
        %v448 = vand.u32 %v447, 4294901760
        %449 = vmatprep.subr.mxu0 %v448
        %v450 = vand.u32 %v276, 4294901760
        %v451 = vsub.f32 %v276, %v450
        %v452 = vand.u32 %v451, 4294901760
        %v453 = vsub.f32 %v451, %v452
        %v454 = vand.u32 %v453, 4294901760
        %455 = vmatpush1.msra.mxu0 %v454
        %v456 = vand.u32 %v279, 4294901760
        %v457 = vsub.f32 %v279, %v456
        %v458 = vand.u32 %v457, 4294901760
        %v459 = vsub.f32 %v457, %v458
        %v460 = vand.u32 %v459, 4294901760
        %461 = vmatprep.subr.mxu0 %v460
        %v462 = vand.u32 %v278, 4294901760
        %v463 = vsub.f32 %v278, %v462
        %v464 = vand.u32 %v463, 4294901760
        %v465 = vsub.f32 %v463, %v464
        %v466 = vand.u32 %v465, 4294901760
        %467 = vmatpush1.msra.mxu0 %v466
        %v468 = vand.u32 %v281, 4294901760
        %v469 = vsub.f32 %v281, %v468
        %v470 = vand.u32 %v469, 4294901760
        %v471 = vsub.f32 %v469, %v470
        %v472 = vand.u32 %v471, 4294901760
        %473 = vmatprep.subr.mxu0 %v472
        %v474 = vand.u32 %v280, 4294901760
        %v475 = vsub.f32 %v280, %v474
        %v476 = vand.u32 %v475, 4294901760
        %v477 = vsub.f32 %v475, %v476
        %v478 = vand.u32 %v477, 4294901760
        %479 = vmatpush1.msra.mxu0 %v478
        %v480 = vand.u32 %v283, 4294901760
        %v481 = vsub.f32 %v283, %v480
        %v482 = vand.u32 %v481, 4294901760
        %v483 = vsub.f32 %v481, %v482
        %v484 = vand.u32 %v483, 4294901760
        %485 = vmatprep.subr.mxu0 %v484
        %v486 = vand.u32 %v282, 4294901760
        %v487 = vsub.f32 %v282, %v486
        %v488 = vand.u32 %v487, 4294901760
        %v489 = vsub.f32 %v487, %v488
        %v490 = vand.u32 %v489, 4294901760
        %491 = vmatpush1.msra.mxu0 %v490
        %v492 = vand.u32 %v285, 4294901760
        %v493 = vsub.f32 %v285, %v492
        %v494 = vand.u32 %v493, 4294901760
        %v495 = vsub.f32 %v493, %v494
        %v496 = vand.u32 %v495, 4294901760
        %497 = vmatprep.subr.mxu0 %v496
        %v498 = vand.u32 %v284, 4294901760
        %v499 = vsub.f32 %v284, %v498
        %v500 = vand.u32 %v499, 4294901760
        %v501 = vsub.f32 %v499, %v500
        %v502 = vand.u32 %v501, 4294901760
        %503 = vmatpush1.msra.mxu0 %v502
        %v504 = vand.u32 %v287, 4294901760
        %v505 = vsub.f32 %v287, %v504
        %v506 = vand.u32 %v505, 4294901760
        %v507 = vsub.f32 %v505, %v506
        %v508 = vand.u32 %v507, 4294901760
        %509 = vmatprep.subr.mxu0 %v508
        %v510 = vand.u32 %v286, 4294901760
        %v511 = vsub.f32 %v286, %v510
        %v512 = vand.u32 %v511, 4294901760
        %v513 = vsub.f32 %v511, %v512
        %v514 = vand.u32 %v513, 4294901760
        %515 = vmatpush1.msra.mxu0 %v514
        %v516 = vand.u32 %v289, 4294901760
        %v517 = vsub.f32 %v289, %v516
        %v518 = vand.u32 %v517, 4294901760
        %v519 = vsub.f32 %v517, %v518
        %v520 = vand.u32 %v519, 4294901760
        %521 = vmatprep.subr.mxu0 %v520
        %v522 = vand.u32 %v288, 4294901760
        %v523 = vsub.f32 %v288, %v522
        %v524 = vand.u32 %v523, 4294901760
        %v525 = vsub.f32 %v523, %v524
        %v526 = vand.u32 %v525, 4294901760
        %527 = vmatpush1.msra.mxu0 %v526
        %528 = vmatprep.subr.mxu0 0.0
        %529 = vmatpush1.msra.mxu0 0.0
        %530 = vmatprep.subr.mxu0 0.0
        %531 = vmatpush1.msra.mxu0 0.0
        %532 = vmatprep.subr.mxu0 0.0
        %533 = vmatpush1.msra.mxu0 0.0
        %534 = vmatprep.subr.mxu0 0.0
        %535 = vmatpush1.msra.mxu0 0.0
        %536 = vmatprep.subr.mxu0 0.0
        %537 = vmatpush1.msra.mxu0 0.0
        %538 = vmatprep.subr.mxu0 0.0
        %539 = vmatpush1.msra.mxu0 0.0
        %540 = vmatprep.subr.mxu0 0.0
        %541 = vmatpush1.msra.mxu0 0.0
        %542 = vmatprep.subr.mxu0 0.0
        %543 = vmatpush1.msra.mxu0 0.0
        %544 = vmatprep.subr.mxu0 0.0
        %545 = vmatpush1.msra.mxu0 0.0
        %546 = vmatprep.subr.mxu0 0.0
        %547 = vmatpush1.msra.mxu0 0.0
        %548 = vmatprep.subr.mxu0 0.0
        %549 = vmatpush1.msra.mxu0 0.0
        %550 = vmatprep.subr.mxu0 0.0
        %551 = vmatpush1.msra.mxu0 0.0
        %552 = vmatprep.subr.mxu0 0.0
        %553 = vmatpush1.msra.mxu0 0.0
        %554 = vmatprep.subr.mxu0 0.0
        %555 = vmatpush1.msra.mxu0 0.0
        %556 = vmatprep.subr.mxu0 0.0
        %557 = vmatpush1.msra.mxu0 0.0
        %558 = vmatprep.subr.mxu0 0.0
        %559 = vmatpush1.msra.mxu0 0.0
        %560 = vmatprep.subr.mxu0 0.0
        %561 = vmatpush1.msra.mxu0 0.0
        %562 = vmatprep.subr.mxu0 0.0
        %563 = vmatpush1.msra.mxu0 0.0
        %564 = vmatprep.subr.mxu0 0.0
        %565 = vmatpush1.msra.mxu0 0.0
        %566 = vmatprep.subr.mxu0 0.0
        %567 = vmatpush1.msra.mxu0 0.0
        %568 = vmatprep.subr.mxu0 0.0
        %569 = vmatpush1.msra.mxu0 0.0
        %570 = vmatprep.subr.mxu0 0.0
        %571 = vmatpush1.msra.mxu0 0.0
        %572 = vmatprep.subr.mxu0 0.0
        %573 = vmatpush1.msra.mxu0 0.0
        %574 = vmatprep.subr.mxu0 0.0
        %575 = vmatpush1.msra.mxu0 0.0
        %576 = vmatprep.mubr.f32.mxu0 0.0
        %v577 = vand.u32 %v296, 4294901760
        %578 = vmatmul.mubr.f32.gmra.mrb[0].mxu0 %v577
        %v579 = vpop.f32.mrb[0].mxu0
        %v580 = vadd.f32 %v395, %v579
        %v581 = vpop.f32.mrb[0].mxu0
        %v582 = vadd.f32 %v397, %v581
        %583 = vmatprep.mubr.f32.mxu0 0.0
        %v584 = vand.u32 %v299, 4294901760
        %585 = vmatmul.mubr.f32.gmra.mrb[0].mxu0 %v584
        %v586 = vpop.f32.mrb[0].mxu0
        %v587 = vadd.f32 %v406, %v586
        %v588 = vpop.f32.mrb[0].mxu0
        %v589 = vadd.f32 %v408, %v588
        %590 = vmatprep.mubr.f32.mxu0 0.0
        %v591 = vand.u32 %v302, 4294901760
        %592 = vmatmul.mubr.f32.gmra.mrb[0].mxu0 %v591
        %v593 = vpop.f32.mrb[0].mxu0
        %v594 = vadd.f32 %v417, %v593
        %v595 = vpop.f32.mrb[0].mxu0
        %v596 = vadd.f32 %v419, %v595
        %597 = vmatprep.mubr.f32.mxu0 0.0
        %v598 = vand.u32 %v305, 4294901760
        %599 = vmatmul.mubr.f32.gmra.mrb[0].mxu0 %v598
        %v600 = vpop.f32.mrb[0].mxu0
        %v601 = vadd.f32 %v428, %v600
        %v602 = vpop.f32.mrb[0].mxu0
        %v603 = vadd.f32 %v430, %v602
        %604 = vdwg.mxu0
        %v605 = vand.u32 %v275, 4294901760
        %v606 = vsub.f32 %v275, %v605
        %607 = vmatprep.subr.mxu0 %v606
        %v608 = vand.u32 %v274, 4294901760
        %v609 = vsub.f32 %v274, %v608
        %610 = vmatpush1.msra.mxu0 %v609
        %v611 = vand.u32 %v277, 4294901760
        %v612 = vsub.f32 %v277, %v611
        %613 = vmatprep.subr.mxu0 %v612
        %v614 = vand.u32 %v276, 4294901760
        %v615 = vsub.f32 %v276, %v614
        %616 = vmatpush1.msra.mxu0 %v615
        %v617 = vand.u32 %v279, 4294901760
        %v618 = vsub.f32 %v279, %v617
        %619 = vmatprep.subr.mxu0 %v618
        %v620 = vand.u32 %v278, 4294901760
        %v621 = vsub.f32 %v278, %v620
        %622 = vmatpush1.msra.mxu0 %v621
        %v623 = vand.u32 %v281, 4294901760
        %v624 = vsub.f32 %v281, %v623
        %625 = vmatprep.subr.mxu0 %v624
        %v626 = vand.u32 %v280, 4294901760
        %v627 = vsub.f32 %v280, %v626
        %628 = vmatpush1.msra.mxu0 %v627
        %v629 = vand.u32 %v283, 4294901760
        %v630 = vsub.f32 %v283, %v629
        %631 = vmatprep.subr.mxu0 %v630
        %v632 = vand.u32 %v282, 4294901760
        %v633 = vsub.f32 %v282, %v632
        %634 = vmatpush1.msra.mxu0 %v633
        %v635 = vand.u32 %v285, 4294901760
        %v636 = vsub.f32 %v285, %v635
        %637 = vmatprep.subr.mxu0 %v636
        %v638 = vand.u32 %v284, 4294901760
        %v639 = vsub.f32 %v284, %v638
        %640 = vmatpush1.msra.mxu0 %v639
        %v641 = vand.u32 %v287, 4294901760
        %v642 = vsub.f32 %v287, %v641
        %643 = vmatprep.subr.mxu0 %v642
        %v644 = vand.u32 %v286, 4294901760
        %v645 = vsub.f32 %v286, %v644
        %646 = vmatpush1.msra.mxu0 %v645
        %v647 = vand.u32 %v289, 4294901760
        %v648 = vsub.f32 %v289, %v647
        %649 = vmatprep.subr.mxu0 %v648
        %v650 = vand.u32 %v288, 4294901760
        %v651 = vsub.f32 %v288, %v650
        %652 = vmatpush1.msra.mxu0 %v651
        %653 = vmatprep.subr.mxu0 0.0
        %654 = vmatpush1.msra.mxu0 0.0
        %655 = vmatprep.subr.mxu0 0.0
        %656 = vmatpush1.msra.mxu0 0.0
        %657 = vmatprep.subr.mxu0 0.0
        %658 = vmatpush1.msra.mxu0 0.0
        %659 = vmatprep.subr.mxu0 0.0
        %660 = vmatpush1.msra.mxu0 0.0
        %661 = vmatprep.subr.mxu0 0.0
        %662 = vmatpush1.msra.mxu0 0.0
        %663 = vmatprep.subr.mxu0 0.0
        %664 = vmatpush1.msra.mxu0 0.0
        %665 = vmatprep.subr.mxu0 0.0
        %666 = vmatpush1.msra.mxu0 0.0
        %667 = vmatprep.subr.mxu0 0.0
        %668 = vmatpush1.msra.mxu0 0.0
        %669 = vmatprep.subr.mxu0 0.0
        %670 = vmatpush1.msra.mxu0 0.0
        %671 = vmatprep.subr.mxu0 0.0
        %672 = vmatpush1.msra.mxu0 0.0
        %673 = vmatprep.subr.mxu0 0.0
        %674 = vmatpush1.msra.mxu0 0.0
        %675 = vmatprep.subr.mxu0 0.0
        %676 = vmatpush1.msra.mxu0 0.0
        %677 = vmatprep.subr.mxu0 0.0
        %678 = vmatpush1.msra.mxu0 0.0
        %679 = vmatprep.subr.mxu0 0.0
        %680 = vmatpush1.msra.mxu0 0.0
        %681 = vmatprep.subr.mxu0 0.0
        %682 = vmatpush1.msra.mxu0 0.0
        %683 = vmatprep.subr.mxu0 0.0
        %684 = vmatpush1.msra.mxu0 0.0
        %685 = vmatprep.subr.mxu0 0.0
        %686 = vmatpush1.msra.mxu0 0.0
        %687 = vmatprep.subr.mxu0 0.0
        %688 = vmatpush1.msra.mxu0 0.0
        %689 = vmatprep.subr.mxu0 0.0
        %690 = vmatpush1.msra.mxu0 0.0
        %691 = vmatprep.subr.mxu0 0.0
        %692 = vmatpush1.msra.mxu0 0.0
        %693 = vmatprep.subr.mxu0 0.0
        %694 = vmatpush1.msra.mxu0 0.0
        %695 = vmatprep.subr.mxu0 0.0
        %696 = vmatpush1.msra.mxu0 0.0
        %697 = vmatprep.subr.mxu0 0.0
        %698 = vmatpush1.msra.mxu0 0.0
        %699 = vmatprep.subr.mxu0 0.0
        %700 = vmatpush1.msra.mxu0 0.0
        %701 = vmatprep.mubr.f32.mxu0 0.0
        %v702 = vand.u32 %v296, 4294901760
        %v703 = vsub.f32 %v296, %v702
        %704 = vmatmul.mubr.f32.gmra.mrb[0].mxu0 %v703
        %v705 = vpop.f32.mrb[0].mxu0
        %v706 = vadd.f32 %v580, %v705
        %v707 = vpop.f32.mrb[0].mxu0
        %v708 = vadd.f32 %v582, %v707
        %709 = vmatprep.mubr.f32.mxu0 0.0
        %v710 = vand.u32 %v299, 4294901760
        %v711 = vsub.f32 %v299, %v710
        %712 = vmatmul.mubr.f32.gmra.mrb[0].mxu0 %v711
        %v713 = vpop.f32.mrb[0].mxu0
        %v714 = vadd.f32 %v587, %v713
        %v715 = vpop.f32.mrb[0].mxu0
        %v716 = vadd.f32 %v589, %v715
        %717 = vmatprep.mubr.f32.mxu0 0.0
        %v718 = vand.u32 %v302, 4294901760
        %v719 = vsub.f32 %v302, %v718
        %720 = vmatmul.mubr.f32.gmra.mrb[0].mxu0 %v719
        %v721 = vpop.f32.mrb[0].mxu0
        %v722 = vadd.f32 %v594, %v721
        %v723 = vpop.f32.mrb[0].mxu0
        %v724 = vadd.f32 %v596, %v723
        %725 = vmatprep.mubr.f32.mxu0 0.0
        %v726 = vand.u32 %v305, 4294901760
        %v727 = vsub.f32 %v305, %v726
        %728 = vmatmul.mubr.f32.gmra.mrb[0].mxu0 %v727
        %v729 = vpop.f32.mrb[0].mxu0
        %v730 = vadd.f32 %v601, %v729
        %v731 = vpop.f32.mrb[0].mxu0
        %v732 = vadd.f32 %v603, %v731
        %733 = vdwg.mxu0
        %v734 = vand.u32 %v275, 4294901760
        %735 = vmatprep.subr.mxu0 %v734
        %v736 = vand.u32 %v274, 4294901760
        %737 = vmatpush1.msra.mxu0 %v736
        %v738 = vand.u32 %v277, 4294901760
        %739 = vmatprep.subr.mxu0 %v738
        %v740 = vand.u32 %v276, 4294901760
        %741 = vmatpush1.msra.mxu0 %v740
        %v742 = vand.u32 %v279, 4294901760
        %743 = vmatprep.subr.mxu0 %v742
        %v744 = vand.u32 %v278, 4294901760
        %745 = vmatpush1.msra.mxu0 %v744
        %v746 = vand.u32 %v281, 4294901760
        %747 = vmatprep.subr.mxu0 %v746
        %v748 = vand.u32 %v280, 4294901760
        %749 = vmatpush1.msra.mxu0 %v748
        %v750 = vand.u32 %v283, 4294901760
        %751 = vmatprep.subr.mxu0 %v750
        %v752 = vand.u32 %v282, 4294901760
        %753 = vmatpush1.msra.mxu0 %v752
        %v754 = vand.u32 %v285, 4294901760
        %755 = vmatprep.subr.mxu0 %v754
        %v756 = vand.u32 %v284, 4294901760
        %757 = vmatpush1.msra.mxu0 %v756
        %v758 = vand.u32 %v287, 4294901760
        %759 = vmatprep.subr.mxu0 %v758
        %v760 = vand.u32 %v286, 4294901760
        %761 = vmatpush1.msra.mxu0 %v760
        %v762 = vand.u32 %v289, 4294901760
        %763 = vmatprep.subr.mxu0 %v762
        %v764 = vand.u32 %v288, 4294901760
        %765 = vmatpush1.msra.mxu0 %v764
        %766 = vmatprep.subr.mxu0 0.0
        %767 = vmatpush1.msra.mxu0 0.0
        %768 = vmatprep.subr.mxu0 0.0
        %769 = vmatpush1.msra.mxu0 0.0
        %770 = vmatprep.subr.mxu0 0.0
        %771 = vmatpush1.msra.mxu0 0.0
        %772 = vmatprep.subr.mxu0 0.0
        %773 = vmatpush1.msra.mxu0 0.0
        %774 = vmatprep.subr.mxu0 0.0
        %775 = vmatpush1.msra.mxu0 0.0
        %776 = vmatprep.subr.mxu0 0.0
        %777 = vmatpush1.msra.mxu0 0.0
        %778 = vmatprep.subr.mxu0 0.0
        %779 = vmatpush1.msra.mxu0 0.0
        %780 = vmatprep.subr.mxu0 0.0
        %781 = vmatpush1.msra.mxu0 0.0
        %782 = vmatprep.subr.mxu0 0.0
        %783 = vmatpush1.msra.mxu0 0.0
        %784 = vmatprep.subr.mxu0 0.0
        %785 = vmatpush1.msra.mxu0 0.0
        %786 = vmatprep.subr.mxu0 0.0
        %787 = vmatpush1.msra.mxu0 0.0
        %788 = vmatprep.subr.mxu0 0.0
        %789 = vmatpush1.msra.mxu0 0.0
        %790 = vmatprep.subr.mxu0 0.0
        %791 = vmatpush1.msra.mxu0 0.0
        %792 = vmatprep.subr.mxu0 0.0
        %793 = vmatpush1.msra.mxu0 0.0
        %794 = vmatprep.subr.mxu0 0.0
        %795 = vmatpush1.msra.mxu0 0.0
        %796 = vmatprep.subr.mxu0 0.0
        %797 = vmatpush1.msra.mxu0 0.0
        %798 = vmatprep.subr.mxu0 0.0
        %799 = vmatpush1.msra.mxu0 0.0
        %800 = vmatprep.subr.mxu0 0.0
        %801 = vmatpush1.msra.mxu0 0.0
        %802 = vmatprep.subr.mxu0 0.0
        %803 = vmatpush1.msra.mxu0 0.0
        %804 = vmatprep.subr.mxu0 0.0
        %805 = vmatpush1.msra.mxu0 0.0
        %806 = vmatprep.subr.mxu0 0.0
        %807 = vmatpush1.msra.mxu0 0.0
        %808 = vmatprep.subr.mxu0 0.0
        %809 = vmatpush1.msra.mxu0 0.0
        %810 = vmatprep.subr.mxu0 0.0
        %811 = vmatpush1.msra.mxu0 0.0
        %812 = vmatprep.subr.mxu0 0.0
        %813 = vmatpush1.msra.mxu0 0.0
        %814 = vmatprep.mubr.f32.mxu0 0.0
        %v815 = vand.u32 %v296, 4294901760
        %v816 = vsub.f32 %v296, %v815
        %v817 = vand.u32 %v816, 4294901760
        %818 = vmatmul.mubr.f32.gmra.mrb[0].mxu0 %v817
        %v819 = vpop.f32.mrb[0].mxu0
        %v820 = vadd.f32 %v706, %v819
        %v821 = vpop.f32.mrb[0].mxu0
        %v822 = vadd.f32 %v708, %v821
        %823 = vmatprep.mubr.f32.mxu0 0.0
        %v824 = vand.u32 %v299, 4294901760
        %v825 = vsub.f32 %v299, %v824
        %v826 = vand.u32 %v825, 4294901760
        %827 = vmatmul.mubr.f32.gmra.mrb[0].mxu0 %v826
        %v828 = vpop.f32.mrb[0].mxu0
        %v829 = vadd.f32 %v714, %v828
        %v830 = vpop.f32.mrb[0].mxu0
        %v831 = vadd.f32 %v716, %v830
        %832 = vmatprep.mubr.f32.mxu0 0.0
        %v833 = vand.u32 %v302, 4294901760
        %v834 = vsub.f32 %v302, %v833
        %v835 = vand.u32 %v834, 4294901760
        %836 = vmatmul.mubr.f32.gmra.mrb[0].mxu0 %v835
        %v837 = vpop.f32.mrb[0].mxu0
        %v838 = vadd.f32 %v722, %v837
        %v839 = vpop.f32.mrb[0].mxu0
        %v840 = vadd.f32 %v724, %v839
        %841 = vmatprep.mubr.f32.mxu0 0.0
        %v842 = vand.u32 %v305, 4294901760
        %v843 = vsub.f32 %v305, %v842
        %v844 = vand.u32 %v843, 4294901760
        %845 = vmatmul.mubr.f32.gmra.mrb[0].mxu0 %v844
        %v846 = vpop.f32.mrb[0].mxu0
        %v847 = vadd.f32 %v730, %v846
        %v848 = vpop.f32.mrb[0].mxu0
        %v849 = vadd.f32 %v732, %v848
        %850 = vdwg.mxu0
        %v851 = vand.u32 %v275, 4294901760
        %v852 = vsub.f32 %v275, %v851
        %v853 = vand.u32 %v852, 4294901760
        %854 = vmatprep.subr.mxu0 %v853
        %v855 = vand.u32 %v274, 4294901760
        %v856 = vsub.f32 %v274, %v855
        %v857 = vand.u32 %v856, 4294901760
        %858 = vmatpush1.msra.mxu0 %v857
        %v859 = vand.u32 %v277, 4294901760
        %v860 = vsub.f32 %v277, %v859
        %v861 = vand.u32 %v860, 4294901760
        %862 = vmatprep.subr.mxu0 %v861
        %v863 = vand.u32 %v276, 4294901760
        %v864 = vsub.f32 %v276, %v863
        %v865 = vand.u32 %v864, 4294901760
        %866 = vmatpush1.msra.mxu0 %v865
        %v867 = vand.u32 %v279, 4294901760
        %v868 = vsub.f32 %v279, %v867
        %v869 = vand.u32 %v868, 4294901760
        %870 = vmatprep.subr.mxu0 %v869
        %v871 = vand.u32 %v278, 4294901760
        %v872 = vsub.f32 %v278, %v871
        %v873 = vand.u32 %v872, 4294901760
        %874 = vmatpush1.msra.mxu0 %v873
        %v875 = vand.u32 %v281, 4294901760
        %v876 = vsub.f32 %v281, %v875
        %v877 = vand.u32 %v876, 4294901760
        %878 = vmatprep.subr.mxu0 %v877
        %v879 = vand.u32 %v280, 4294901760
        %v880 = vsub.f32 %v280, %v879
        %v881 = vand.u32 %v880, 4294901760
        %882 = vmatpush1.msra.mxu0 %v881
        %v883 = vand.u32 %v283, 4294901760
        %v884 = vsub.f32 %v283, %v883
        %v885 = vand.u32 %v884, 4294901760
        %886 = vmatprep.subr.mxu0 %v885
        %v887 = vand.u32 %v282, 4294901760
        %v888 = vsub.f32 %v282, %v887
        %v889 = vand.u32 %v888, 4294901760
        %890 = vmatpush1.msra.mxu0 %v889
        %v891 = vand.u32 %v285, 4294901760
        %v892 = vsub.f32 %v285, %v891
        %v893 = vand.u32 %v892, 4294901760
        %894 = vmatprep.subr.mxu0 %v893
        %v895 = vand.u32 %v284, 4294901760
        %v896 = vsub.f32 %v284, %v895
        %v897 = vand.u32 %v896, 4294901760
        %898 = vmatpush1.msra.mxu0 %v897
        %v899 = vand.u32 %v287, 4294901760
        %v900 = vsub.f32 %v287, %v899
        %v901 = vand.u32 %v900, 4294901760
        %902 = vmatprep.subr.mxu0 %v901
        %v903 = vand.u32 %v286, 4294901760
        %v904 = vsub.f32 %v286, %v903
        %v905 = vand.u32 %v904, 4294901760
        %906 = vmatpush1.msra.mxu0 %v905
        %v907 = vand.u32 %v289, 4294901760
        %v908 = vsub.f32 %v289, %v907
        %v909 = vand.u32 %v908, 4294901760
        %910 = vmatprep.subr.mxu0 %v909
        %v911 = vand.u32 %v288, 4294901760
        %v912 = vsub.f32 %v288, %v911
        %v913 = vand.u32 %v912, 4294901760
        %914 = vmatpush1.msra.mxu0 %v913
        %915 = vmatprep.subr.mxu0 0.0
        %916 = vmatpush1.msra.mxu0 0.0
        %917 = vmatprep.subr.mxu0 0.0
        %918 = vmatpush1.msra.mxu0 0.0
        %919 = vmatprep.subr.mxu0 0.0
        %920 = vmatpush1.msra.mxu0 0.0
        %921 = vmatprep.subr.mxu0 0.0
        %922 = vmatpush1.msra.mxu0 0.0
        %923 = vmatprep.subr.mxu0 0.0
        %924 = vmatpush1.msra.mxu0 0.0
        %925 = vmatprep.subr.mxu0 0.0
        %926 = vmatpush1.msra.mxu0 0.0
        %927 = vmatprep.subr.mxu0 0.0
        %928 = vmatpush1.msra.mxu0 0.0
        %929 = vmatprep.subr.mxu0 0.0
        %930 = vmatpush1.msra.mxu0 0.0
        %931 = vmatprep.subr.mxu0 0.0
        %932 = vmatpush1.msra.mxu0 0.0
        %933 = vmatprep.subr.mxu0 0.0
        %934 = vmatpush1.msra.mxu0 0.0
        %935 = vmatprep.subr.mxu0 0.0
        %936 = vmatpush1.msra.mxu0 0.0
        %937 = vmatprep.subr.mxu0 0.0
        %938 = vmatpush1.msra.mxu0 0.0
        %939 = vmatprep.subr.mxu0 0.0
        %940 = vmatpush1.msra.mxu0 0.0
        %941 = vmatprep.subr.mxu0 0.0
        %942 = vmatpush1.msra.mxu0 0.0
        %943 = vmatprep.subr.mxu0 0.0
        %944 = vmatpush1.msra.mxu0 0.0
        %945 = vmatprep.subr.mxu0 0.0
        %946 = vmatpush1.msra.mxu0 0.0
        %947 = vmatprep.subr.mxu0 0.0
        %948 = vmatpush1.msra.mxu0 0.0
        %949 = vmatprep.subr.mxu0 0.0
        %950 = vmatpush1.msra.mxu0 0.0
        %951 = vmatprep.subr.mxu0 0.0
        %952 = vmatpush1.msra.mxu0 0.0
        %953 = vmatprep.subr.mxu0 0.0
        %954 = vmatpush1.msra.mxu0 0.0
        %955 = vmatprep.subr.mxu0 0.0
        %956 = vmatpush1.msra.mxu0 0.0
        %957 = vmatprep.subr.mxu0 0.0
        %958 = vmatpush1.msra.mxu0 0.0
        %959 = vmatprep.subr.mxu0 0.0
        %960 = vmatpush1.msra.mxu0 0.0
        %961 = vmatprep.subr.mxu0 0.0
        %962 = vmatpush1.msra.mxu0 0.0
        %963 = vmatprep.mubr.f32.mxu0 0.0
        %v964 = vand.u32 %v296, 4294901760
        %965 = vmatmul.mubr.f32.gmra.mrb[0].mxu0 %v964
        %v966 = vpop.f32.mrb[0].mxu0
        %v967 = vadd.f32 %v820, %v966
        %v968 = vpop.f32.mrb[0].mxu0
        %v969 = vadd.f32 %v822, %v968
        %970 = vmatprep.mubr.f32.mxu0 0.0
        %v971 = vand.u32 %v299, 4294901760
        %972 = vmatmul.mubr.f32.gmra.mrb[0].mxu0 %v971
        %v973 = vpop.f32.mrb[0].mxu0
        %v974 = vadd.f32 %v829, %v973
        %v975 = vpop.f32.mrb[0].mxu0
        %v976 = vadd.f32 %v831, %v975
        %977 = vmatprep.mubr.f32.mxu0 0.0
        %v978 = vand.u32 %v302, 4294901760
        %979 = vmatmul.mubr.f32.gmra.mrb[0].mxu0 %v978
        %v980 = vpop.f32.mrb[0].mxu0
        %v981 = vadd.f32 %v838, %v980
        %v982 = vpop.f32.mrb[0].mxu0
        %v983 = vadd.f32 %v840, %v982
        %984 = vmatprep.mubr.f32.mxu0 0.0
        %v985 = vand.u32 %v305, 4294901760
        %986 = vmatmul.mubr.f32.gmra.mrb[0].mxu0 %v985
        %v987 = vpop.f32.mrb[0].mxu0
        %v988 = vadd.f32 %v847, %v987
        %v989 = vpop.f32.mrb[0].mxu0
        %v990 = vadd.f32 %v849, %v989
        %991 = vdwg.mxu0
        %v992 = vand.u32 %v275, 4294901760
        %993 = vmatprep.subr.mxu0 %v992
        %v994 = vand.u32 %v274, 4294901760
        %995 = vmatpush1.msra.mxu0 %v994
        %v996 = vand.u32 %v277, 4294901760
        %997 = vmatprep.subr.mxu0 %v996
        %v998 = vand.u32 %v276, 4294901760
        %999 = vmatpush1.msra.mxu0 %v998
        %v1000 = vand.u32 %v279, 4294901760
        %1001 = vmatprep.subr.mxu0 %v1000
        %v1002 = vand.u32 %v278, 4294901760
        %1003 = vmatpush1.msra.mxu0 %v1002
        %v1004 = vand.u32 %v281, 4294901760
        %1005 = vmatprep.subr.mxu0 %v1004
        %v1006 = vand.u32 %v280, 4294901760
        %1007 = vmatpush1.msra.mxu0 %v1006
        %v1008 = vand.u32 %v283, 4294901760
        %1009 = vmatprep.subr.mxu0 %v1008
        %v1010 = vand.u32 %v282, 4294901760
        %1011 = vmatpush1.msra.mxu0 %v1010
        %v1012 = vand.u32 %v285, 4294901760
        %1013 = vmatprep.subr.mxu0 %v1012
        %v1014 = vand.u32 %v284, 4294901760
        %1015 = vmatpush1.msra.mxu0 %v1014
        %v1016 = vand.u32 %v287, 4294901760
        %1017 = vmatprep.subr.mxu0 %v1016
        %v1018 = vand.u32 %v286, 4294901760
        %1019 = vmatpush1.msra.mxu0 %v1018
        %v1020 = vand.u32 %v289, 4294901760
        %1021 = vmatprep.subr.mxu0 %v1020
        %v1022 = vand.u32 %v288, 4294901760
        %1023 = vmatpush1.msra.mxu0 %v1022
        %1024 = vmatprep.subr.mxu0 0.0
        %1025 = vmatpush1.msra.mxu0 0.0
        %1026 = vmatprep.subr.mxu0 0.0
        %1027 = vmatpush1.msra.mxu0 0.0
        %1028 = vmatprep.subr.mxu0 0.0
        %1029 = vmatpush1.msra.mxu0 0.0
        %1030 = vmatprep.subr.mxu0 0.0
        %1031 = vmatpush1.msra.mxu0 0.0
        %1032 = vmatprep.subr.mxu0 0.0
        %1033 = vmatpush1.msra.mxu0 0.0
        %1034 = vmatprep.subr.mxu0 0.0
        %1035 = vmatpush1.msra.mxu0 0.0
        %1036 = vmatprep.subr.mxu0 0.0
        %1037 = vmatpush1.msra.mxu0 0.0
        %1038 = vmatprep.subr.mxu0 0.0
        %1039 = vmatpush1.msra.mxu0 0.0
        %1040 = vmatprep.subr.mxu0 0.0
        %1041 = vmatpush1.msra.mxu0 0.0
        %1042 = vmatprep.subr.mxu0 0.0
        %1043 = vmatpush1.msra.mxu0 0.0
        %1044 = vmatprep.subr.mxu0 0.0
        %1045 = vmatpush1.msra.mxu0 0.0
        %1046 = vmatprep.subr.mxu0 0.0
        %1047 = vmatpush1.msra.mxu0 0.0
        %1048 = vmatprep.subr.mxu0 0.0
        %1049 = vmatpush1.msra.mxu0 0.0
        %1050 = vmatprep.subr.mxu0 0.0
        %1051 = vmatpush1.msra.mxu0 0.0
        %1052 = vmatprep.subr.mxu0 0.0
        %1053 = vmatpush1.msra.mxu0 0.0
        %1054 = vmatprep.subr.mxu0 0.0
        %1055 = vmatpush1.msra.mxu0 0.0
        %1056 = vmatprep.subr.mxu0 0.0
        %1057 = vmatpush1.msra.mxu0 0.0
        %1058 = vmatprep.subr.mxu0 0.0
        %1059 = vmatpush1.msra.mxu0 0.0
        %1060 = vmatprep.subr.mxu0 0.0
        %1061 = vmatpush1.msra.mxu0 0.0
        %1062 = vmatprep.subr.mxu0 0.0
        %1063 = vmatpush1.msra.mxu0 0.0
        %1064 = vmatprep.subr.mxu0 0.0
        %1065 = vmatpush1.msra.mxu0 0.0
        %1066 = vmatprep.subr.mxu0 0.0
        %1067 = vmatpush1.msra.mxu0 0.0
        %1068 = vmatprep.subr.mxu0 0.0
        %1069 = vmatpush1.msra.mxu0 0.0
        %1070 = vmatprep.subr.mxu0 0.0
        %1071 = vmatpush1.msra.mxu0 0.0
        %1072 = vmatprep.mubr.f32.mxu0 0.0
        %v1073 = vand.u32 %v296, 4294901760
        %1074 = vmatmul.mubr.f32.gmra.mrb[0].mxu0 %v1073
        %v1075 = vpop.f32.mrb[0].mxu0
        %v1076 = vadd.f32 %v967, %v1075
        %v1077 = vpop.f32.mrb[0].mxu0
        %v1078 = vadd.f32 %v969, %v1077
        %1079 = vmatprep.mubr.f32.mxu0 0.0
        %v1080 = vand.u32 %v299, 4294901760
        %1081 = vmatmul.mubr.f32.gmra.mrb[0].mxu0 %v1080
        %v1082 = vpop.f32.mrb[0].mxu0
        %v1083 = vadd.f32 %v974, %v1082
        %v1084 = vpop.f32.mrb[0].mxu0
        %v1085 = vadd.f32 %v976, %v1084
        %1086 = vmatprep.mubr.f32.mxu0 0.0
        %v1087 = vand.u32 %v302, 4294901760
        %1088 = vmatmul.mubr.f32.gmra.mrb[0].mxu0 %v1087
        %v1089 = vpop.f32.mrb[0].mxu0
        %v1090 = vadd.f32 %v981, %v1089
        %v1091 = vpop.f32.mrb[0].mxu0
        %v1092 = vadd.f32 %v983, %v1091
        %1093 = vmatprep.mubr.f32.mxu0 0.0
        %v1094 = vand.u32 %v305, 4294901760
        %1095 = vmatmul.mubr.f32.gmra.mrb[0].mxu0 %v1094
        %v1096 = vpop.f32.mrb[0].mxu0
        %v1097 = vadd.f32 %v988, %v1096
        %v1098 = vpop.f32.mrb[0].mxu0
        %v1099 = vadd.f32 %v990, %v1098
        %1100 = vdwg.mxu0
        %v1101 = vmul.f32 %v274, %v274
        %v1102 = vmul.f32 %v275, %v275
        %v1103 = vmul.f32 %v276, %v276
        %v1104 = vmul.f32 %v277, %v277
        %v1105 = vmul.f32 %v278, %v278
        %v1106 = vmul.f32 %v279, %v279
        %v1107 = vmul.f32 %v280, %v280
        %v1108 = vmul.f32 %v281, %v281
        %v1109 = vmul.f32 %v282, %v282
        %v1110 = vmul.f32 %v283, %v283
        %v1111 = vmul.f32 %v284, %v284
        %v1112 = vmul.f32 %v285, %v285
        %v1113 = vmul.f32 %v286, %v286
        %v1114 = vmul.f32 %v287, %v287
        %v1115 = vmul.f32 %v288, %v288
        %v1116 = vmul.f32 %v289, %v289
        %v1117 = vadd.f32 %v1101, %v1103
        %v1118 = vadd.f32 %v1117, %v1105
        %v1119 = vadd.f32 %v1118, %v1107
        %v1120 = vadd.f32 %v1119, %v1109
        %v1121 = vadd.f32 %v1120, %v1111
        %v1122 = vadd.f32 %v1121, %v1113
        %v1123 = vadd.f32 %v1122, %v1115
        %v1124 = vrot.slane %v1123, 4
        %v1125 = vadd.f32 %v1123, %v1124
        %v1126 = vrot.slane %v1125, 2
        %v1127 = vadd.f32 %v1125, %v1126
        %v1128 = vrot.slane %v1127, 1
        %v1129 = vadd.f32 %v1127, %v1128
        %v1130 = vadd.f32 %v1102, %v1104
        %v1131 = vadd.f32 %v1130, %v1106
        %v1132 = vadd.f32 %v1131, %v1108
        %v1133 = vadd.f32 %v1132, %v1110
        %v1134 = vadd.f32 %v1133, %v1112
        %v1135 = vadd.f32 %v1134, %v1114
        %v1136 = vadd.f32 %v1135, %v1116
        %v1137 = vrot.slane %v1136, 4
        %v1138 = vadd.f32 %v1136, %v1137
        %v1139 = vrot.slane %v1138, 2
        %v1140 = vadd.f32 %v1138, %v1139
        %v1141 = vrot.slane %v1140, 1
        %v1142 = vadd.f32 %v1140, %v1141
        %v1143 = vld [vmem:[%s4] sm:$0xff]
        %v1144 = vld [vmem:[%s4 + $0x8] sm:$0xff]
        %v1145 = vld [vmem:[%s4 + $0x10] sm:$0xff]
        %v1146 = vld [vmem:[%s4 + $0x18] sm:$0xff]
        %1148 = vset.pattern.permute.xlu0 0
        %1149 = vperm.xlu0 %1148, %v1143
        %v1150 = vpop.permute.xlu0 %1149
        %1153 = vset.pattern.permute.xlu0 0
        %1154 = vperm.xlu0 %1153, %v1144
        %v1155 = vpop.permute.xlu0 %1154
        %1158 = vset.pattern.permute.xlu0 0
        %1159 = vperm.xlu0 %1158, %v1145
        %v1160 = vpop.permute.xlu0 %1159
        %1163 = vset.pattern.permute.xlu0 0
        %1164 = vperm.xlu0 %1163, %v1146
        %v1165 = vpop.permute.xlu0 %1164
        %v1167 = vmul.f32 %v1150, %v1129
        %v1168 = vmul.f32 %v1150, %v1142
        %v1169 = vmul.f32 %v1155, %v1129
        %v1170 = vmul.f32 %v1155, %v1142
        %v1171 = vmul.f32 %v1160, %v1129
        %v1172 = vmul.f32 %v1160, %v1142
        %v1173 = vmul.f32 %v1165, %v1129
        %v1174 = vmul.f32 %v1165, %v1142
        %v1175 = vadd.f32 %v1167, %v1076
        %v1176 = vadd.f32 %v1168, %v1078
        %v1177 = vadd.f32 %v1169, %v1083
        %v1178 = vadd.f32 %v1170, %v1085
        %v1179 = vadd.f32 %v1171, %v1090
        %v1180 = vadd.f32 %v1172, %v1092
        %v1181 = vadd.f32 %v1173, %v1097
        %v1182 = vadd.f32 %v1174, %v1099
        %v1183 = vld [vmem:[%s3] sm:$0xff]
        %v1184 = vld [vmem:[%s3 + $0x8] sm:$0xff]
        %v1185 = vld [vmem:[%s3 + $0x10] sm:$0xff]
        %v1186 = vld [vmem:[%s3 + $0x18] sm:$0xff]
        %1188 = vset.pattern.permute.xlu0 0
        %1189 = vperm.xlu0 %1188, %v1183
        %v1190 = vpop.permute.xlu0 %1189
        %1193 = vset.pattern.permute.xlu0 0
        %1194 = vperm.xlu0 %1193, %v1184
        %v1195 = vpop.permute.xlu0 %1194
        %1198 = vset.pattern.permute.xlu0 0
        %1199 = vperm.xlu0 %1198, %v1185
        %v1200 = vpop.permute.xlu0 %1199
        %1203 = vset.pattern.permute.xlu0 0
        %1204 = vperm.xlu0 %1203, %v1186
        %v1205 = vpop.permute.xlu0 %1204
        %v1207 = vadd.f32 %v1175, %v1190
        %v1208 = vadd.f32 %v1176, %v1190
        %v1209 = vadd.f32 %v1177, %v1195
        %v1210 = vadd.f32 %v1178, %v1195
        %v1211 = vadd.f32 %v1179, %v1200
        %v1212 = vadd.f32 %v1180, %v1200
        %v1213 = vadd.f32 %v1181, %v1205
        %v1214 = vadd.f32 %v1182, %v1205
        %v1215 = vmax.f32 %v1207, %v1211
        %v1216 = vmax.f32 %v1209, %v1213
        %v1217 = vmax.f32 %v1215, %v1216
        %v1218 = vrot.slane %v1217, 4
        %v1219 = vmax.f32 %v1217, %v1218
        %v1220 = vrot.slane %v1219, 2
        %v1221 = vmax.f32 %v1219, %v1220
        %v1222 = vrot.slane %v1221, 1
        %v1223 = vmax.f32 %v1221, %v1222
        %v1224 = vmax.f32 %v1208, %v1212
        %v1225 = vmax.f32 %v1210, %v1214
        %v1226 = vmax.f32 %v1224, %v1225
        %v1227 = vrot.slane %v1226, 4
        %v1228 = vmax.f32 %v1226, %v1227
        %v1229 = vrot.slane %v1228, 2
        %v1230 = vmax.f32 %v1228, %v1229
        %v1231 = vrot.slane %v1230, 1
        %v1232 = vmax.f32 %v1230, %v1231
        %v1233 = vsub.f32 %v1207, %v1223
        %v1234 = vsub.f32 %v1208, %v1232
        %v1235 = vsub.f32 %v1209, %v1223
        %v1236 = vsub.f32 %v1210, %v1232
        %v1237 = vsub.f32 %v1211, %v1223
        %v1238 = vsub.f32 %v1212, %v1232
        %v1239 = vsub.f32 %v1213, %v1223
        %v1240 = vsub.f32 %v1214, %v1232
        %v1241 = vmul.f32 %v1233, 1.442695
        %v1242 = vpow.pop %v1241
        %v1243 = vmul.f32 %v1234, 1.442695
        %v1244 = vpow.pop %v1243
        %v1245 = vmul.f32 %v1235, 1.442695
        %v1246 = vpow.pop %v1245
        %v1247 = vmul.f32 %v1236, 1.442695
        %v1248 = vpow.pop %v1247
        %v1249 = vmul.f32 %v1237, 1.442695
        %v1250 = vpow.pop %v1249
        %v1251 = vmul.f32 %v1238, 1.442695
        %v1252 = vpow.pop %v1251
        %v1253 = vmul.f32 %v1239, 1.442695
        %v1254 = vpow.pop %v1253
        %v1255 = vmul.f32 %v1240, 1.442695
        %v1256 = vpow.pop %v1255
        %v1257 = vadd.f32 %v1242, %v1246
        %v1258 = vadd.f32 %v1257, %v1250
        %v1259 = vadd.f32 %v1258, %v1254
        %v1260 = vrot.slane %v1259, 4
        %v1261 = vadd.f32 %v1259, %v1260
        %v1262 = vrot.slane %v1261, 2
        %v1263 = vadd.f32 %v1261, %v1262
        %v1264 = vrot.slane %v1263, 1
        %v1265 = vadd.f32 %v1263, %v1264
        %v1266 = vadd.f32 %v1244, %v1248
        %v1267 = vadd.f32 %v1266, %v1252
        %v1268 = vadd.f32 %v1267, %v1256
        %v1269 = vrot.slane %v1268, 4
        %v1270 = vadd.f32 %v1268, %v1269
        %v1271 = vrot.slane %v1270, 2
        %v1272 = vadd.f32 %v1270, %v1271
        %v1273 = vrot.slane %v1272, 1
        %v1274 = vadd.f32 %v1272, %v1273
        %v1275 = vrcp.pop %v1265
        %v1276 = vmul.f32 1.0, %v1275
        %v1277 = vrcp.pop %v1274
        %v1278 = vmul.f32 1.0, %v1277
        %v1279 = vmul.f32 %v1242, %v1276
        %v1280 = vmul.f32 %v1244, %v1278
        %v1281 = vmul.f32 %v1246, %v1276
        %v1282 = vmul.f32 %v1248, %v1278
        %v1283 = vmul.f32 %v1250, %v1276
        %v1284 = vmul.f32 %v1252, %v1278
        %v1285 = vmul.f32 %v1254, %v1276
        %v1286 = vmul.f32 %v1256, %v1278
        %v1287 = vld [vmem:[#allocation2] sm:$0xff]
        %v1288 = vld [vmem:[#allocation2 + $0x8] sm:$0xff]
        %v1289 = vld [vmem:[#allocation2 + $0x10] sm:$0xff]
        %v1290 = vld [vmem:[#allocation2 + $0x18] sm:$0xff]
        %v1291 = vand.u32 %v275, 4294901760
        %1292 = vmatprep.subr.mxu0 %v1291
        %v1293 = vand.u32 %v274, 4294901760
        %1294 = vmatpush1.xpose.msra.mxu0 %v1293
        %v1295 = vand.u32 %v277, 4294901760
        %1296 = vmatprep.subr.mxu0 %v1295
        %v1297 = vand.u32 %v276, 4294901760
        %1298 = vmatpush1.xpose.msra.mxu0 %v1297
        %v1299 = vand.u32 %v279, 4294901760
        %1300 = vmatprep.subr.mxu0 %v1299
        %v1301 = vand.u32 %v278, 4294901760
        %1302 = vmatpush1.xpose.msra.mxu0 %v1301
        %v1303 = vand.u32 %v281, 4294901760
        %1304 = vmatprep.subr.mxu0 %v1303
        %v1305 = vand.u32 %v280, 4294901760
        %1306 = vmatpush1.xpose.msra.mxu0 %v1305
        %v1307 = vand.u32 %v283, 4294901760
        %1308 = vmatprep.subr.mxu0 %v1307
        %v1309 = vand.u32 %v282, 4294901760
        %1310 = vmatpush1.xpose.msra.mxu0 %v1309
        %v1311 = vand.u32 %v285, 4294901760
        %1312 = vmatprep.subr.mxu0 %v1311
        %v1313 = vand.u32 %v284, 4294901760
        %1314 = vmatpush1.xpose.msra.mxu0 %v1313
        %v1315 = vand.u32 %v287, 4294901760
        %1316 = vmatprep.subr.mxu0 %v1315
        %v1317 = vand.u32 %v286, 4294901760
        %1318 = vmatpush1.xpose.msra.mxu0 %v1317
        %v1319 = vand.u32 %v289, 4294901760
        %1320 = vmatprep.subr.mxu0 %v1319
        %v1321 = vand.u32 %v288, 4294901760
        %1322 = vmatpush1.xpose.msra.mxu0 %v1321
        %1323 = vmatprep.subr.mxu0 0.0
        %1324 = vmatpush1.xpose.msra.mxu0 0.0
        %1325 = vmatprep.subr.mxu0 0.0
        %1326 = vmatpush1.xpose.msra.mxu0 0.0
        %1327 = vmatprep.subr.mxu0 0.0
        %1328 = vmatpush1.xpose.msra.mxu0 0.0
        %1329 = vmatprep.subr.mxu0 0.0
        %1330 = vmatpush1.xpose.msra.mxu0 0.0
        %1331 = vmatprep.subr.mxu0 0.0
        %1332 = vmatpush1.xpose.msra.mxu0 0.0
        %1333 = vmatprep.subr.mxu0 0.0
        %1334 = vmatpush1.xpose.msra.mxu0 0.0
        %1335 = vmatprep.subr.mxu0 0.0
        %1336 = vmatpush1.xpose.msra.mxu0 0.0
        %1337 = vmatprep.subr.mxu0 0.0
        %1338 = vmatpush1.xpose.msra.mxu0 0.0
        %1339 = vmatprep.subr.mxu0 0.0
        %1340 = vmatpush1.xpose.msra.mxu0 0.0
        %1341 = vmatprep.subr.mxu0 0.0
        %1342 = vmatpush1.xpose.msra.mxu0 0.0
        %1343 = vmatprep.subr.mxu0 0.0
        %1344 = vmatpush1.xpose.msra.mxu0 0.0
        %1345 = vmatprep.subr.mxu0 0.0
        %1346 = vmatpush1.xpose.msra.mxu0 0.0
        %1347 = vmatprep.subr.mxu0 0.0
        %1348 = vmatpush1.xpose.msra.mxu0 0.0
        %1349 = vmatprep.subr.mxu0 0.0
        %1350 = vmatpush1.xpose.msra.mxu0 0.0
        %1351 = vmatprep.subr.mxu0 0.0
        %1352 = vmatpush1.xpose.msra.mxu0 0.0
        %1353 = vmatprep.subr.mxu0 0.0
        %1354 = vmatpush1.xpose.msra.mxu0 0.0
        %1355 = vmatprep.subr.mxu0 0.0
        %1356 = vmatpush1.xpose.msra.mxu0 0.0
        %1357 = vmatprep.subr.mxu0 0.0
        %1358 = vmatpush1.xpose.msra.mxu0 0.0
        %1359 = vmatprep.subr.mxu0 0.0
        %1360 = vmatpush1.xpose.msra.mxu0 0.0
        %1361 = vmatprep.subr.mxu0 0.0
        %1362 = vmatpush1.xpose.msra.mxu0 0.0
        %1363 = vmatprep.subr.mxu0 0.0
        %1364 = vmatpush1.xpose.msra.mxu0 0.0
        %1365 = vmatprep.subr.mxu0 0.0
        %1366 = vmatpush1.xpose.msra.mxu0 0.0
        %1367 = vmatprep.subr.mxu0 0.0
        %1368 = vmatpush1.xpose.msra.mxu0 0.0
        %1369 = vmatprep.subr.mxu0 0.0
        %1370 = vmatpush1.xpose.msra.mxu0 0.0
        %v1371 = vand.u32 %v1280, 4294901760
        %v1372 = vsub.f32 %v1280, %v1371
        %v1373 = vand.u32 %v1372, 4294901760
        %v1374 = vsub.f32 %v1372, %v1373
        %v1375 = vand.u32 %v1374, 4294901760
        %1376 = vmatprep.mubr.f32.mxu0 %v1375
        %v1377 = vand.u32 %v1279, 4294901760
        %v1378 = vsub.f32 %v1279, %v1377
        %v1379 = vand.u32 %v1378, 4294901760
        %v1380 = vsub.f32 %v1378, %v1379
        %v1381 = vand.u32 %v1380, 4294901760
        %1382 = vmatmul.mubr.f32.gmra.mrb[0].mxu0 %v1381
        %v1383 = vpop.f32.mrb[0].mxu0
        %v1384 = vadd.f32 0.0, %v1383
        %v1385 = vpop.f32.mrb[0].mxu0
        %v1386 = vand.u32 %v1282, 4294901760
        %v1387 = vsub.f32 %v1282, %v1386
        %v1388 = vand.u32 %v1387, 4294901760
        %v1389 = vsub.f32 %v1387, %v1388
        %v1390 = vand.u32 %v1389, 4294901760
        %1391 = vmatprep.mubr.f32.mxu0 %v1390
        %v1392 = vand.u32 %v1281, 4294901760
        %v1393 = vsub.f32 %v1281, %v1392
        %v1394 = vand.u32 %v1393, 4294901760
        %v1395 = vsub.f32 %v1393, %v1394
        %v1396 = vand.u32 %v1395, 4294901760
        %1397 = vmatmul.mubr.f32.gmra.mrb[0].mxu0 %v1396
        %v1398 = vpop.f32.mrb[0].mxu0
        %v1399 = vadd.f32 0.0, %v1398
        %v1400 = vpop.f32.mrb[0].mxu0
        %v1401 = vand.u32 %v1284, 4294901760
        %v1402 = vsub.f32 %v1284, %v1401
        %v1403 = vand.u32 %v1402, 4294901760
        %v1404 = vsub.f32 %v1402, %v1403
        %v1405 = vand.u32 %v1404, 4294901760
        %1406 = vmatprep.mubr.f32.mxu0 %v1405
        %v1407 = vand.u32 %v1283, 4294901760
        %v1408 = vsub.f32 %v1283, %v1407
        %v1409 = vand.u32 %v1408, 4294901760
        %v1410 = vsub.f32 %v1408, %v1409
        %v1411 = vand.u32 %v1410, 4294901760
        %1412 = vmatmul.mubr.f32.gmra.mrb[0].mxu0 %v1411
        %v1413 = vpop.f32.mrb[0].mxu0
        %v1414 = vadd.f32 0.0, %v1413
        %v1415 = vpop.f32.mrb[0].mxu0
        %v1416 = vand.u32 %v1286, 4294901760
        %v1417 = vsub.f32 %v1286, %v1416
        %v1418 = vand.u32 %v1417, 4294901760
        %v1419 = vsub.f32 %v1417, %v1418
        %v1420 = vand.u32 %v1419, 4294901760
        %1421 = vmatprep.mubr.f32.mxu0 %v1420
        %v1422 = vand.u32 %v1285, 4294901760
        %v1423 = vsub.f32 %v1285, %v1422
        %v1424 = vand.u32 %v1423, 4294901760
        %v1425 = vsub.f32 %v1423, %v1424
        %v1426 = vand.u32 %v1425, 4294901760
        %1427 = vmatmul.mubr.f32.gmra.mrb[0].mxu0 %v1426
        %v1428 = vpop.f32.mrb[0].mxu0
        %v1429 = vadd.f32 0.0, %v1428
        %v1430 = vpop.f32.mrb[0].mxu0
        %1431 = vdwg.mxu0
        %v1432 = vand.u32 %v275, 4294901760
        %v1433 = vsub.f32 %v275, %v1432
        %v1434 = vand.u32 %v1433, 4294901760
        %v1435 = vsub.f32 %v1433, %v1434
        %v1436 = vand.u32 %v1435, 4294901760
        %1437 = vmatprep.subr.mxu0 %v1436
        %v1438 = vand.u32 %v274, 4294901760
        %v1439 = vsub.f32 %v274, %v1438
        %v1440 = vand.u32 %v1439, 4294901760
        %v1441 = vsub.f32 %v1439, %v1440
        %v1442 = vand.u32 %v1441, 4294901760
        %1443 = vmatpush1.xpose.msra.mxu0 %v1442
        %v1444 = vand.u32 %v277, 4294901760
        %v1445 = vsub.f32 %v277, %v1444
        %v1446 = vand.u32 %v1445, 4294901760
        %v1447 = vsub.f32 %v1445, %v1446
        %v1448 = vand.u32 %v1447, 4294901760
        %1449 = vmatprep.subr.mxu0 %v1448
        %v1450 = vand.u32 %v276, 4294901760
        %v1451 = vsub.f32 %v276, %v1450
        %v1452 = vand.u32 %v1451, 4294901760
        %v1453 = vsub.f32 %v1451, %v1452
        %v1454 = vand.u32 %v1453, 4294901760
        %1455 = vmatpush1.xpose.msra.mxu0 %v1454
        %v1456 = vand.u32 %v279, 4294901760
        %v1457 = vsub.f32 %v279, %v1456
        %v1458 = vand.u32 %v1457, 4294901760
        %v1459 = vsub.f32 %v1457, %v1458
        %v1460 = vand.u32 %v1459, 4294901760
        %1461 = vmatprep.subr.mxu0 %v1460
        %v1462 = vand.u32 %v278, 4294901760
        %v1463 = vsub.f32 %v278, %v1462
        %v1464 = vand.u32 %v1463, 4294901760
        %v1465 = vsub.f32 %v1463, %v1464
        %v1466 = vand.u32 %v1465, 4294901760
        %1467 = vmatpush1.xpose.msra.mxu0 %v1466
        %v1468 = vand.u32 %v281, 4294901760
        %v1469 = vsub.f32 %v281, %v1468
        %v1470 = vand.u32 %v1469, 4294901760
        %v1471 = vsub.f32 %v1469, %v1470
        %v1472 = vand.u32 %v1471, 4294901760
        %1473 = vmatprep.subr.mxu0 %v1472
        %v1474 = vand.u32 %v280, 4294901760
        %v1475 = vsub.f32 %v280, %v1474
        %v1476 = vand.u32 %v1475, 4294901760
        %v1477 = vsub.f32 %v1475, %v1476
        %v1478 = vand.u32 %v1477, 4294901760
        %1479 = vmatpush1.xpose.msra.mxu0 %v1478
        %v1480 = vand.u32 %v283, 4294901760
        %v1481 = vsub.f32 %v283, %v1480
        %v1482 = vand.u32 %v1481, 4294901760
        %v1483 = vsub.f32 %v1481, %v1482
        %v1484 = vand.u32 %v1483, 4294901760
        %1485 = vmatprep.subr.mxu0 %v1484
        %v1486 = vand.u32 %v282, 4294901760
        %v1487 = vsub.f32 %v282, %v1486
        %v1488 = vand.u32 %v1487, 4294901760
        %v1489 = vsub.f32 %v1487, %v1488
        %v1490 = vand.u32 %v1489, 4294901760
        %1491 = vmatpush1.xpose.msra.mxu0 %v1490
        %v1492 = vand.u32 %v285, 4294901760
        %v1493 = vsub.f32 %v285, %v1492
        %v1494 = vand.u32 %v1493, 4294901760
        %v1495 = vsub.f32 %v1493, %v1494
        %v1496 = vand.u32 %v1495, 4294901760
        %1497 = vmatprep.subr.mxu0 %v1496
        %v1498 = vand.u32 %v284, 4294901760
        %v1499 = vsub.f32 %v284, %v1498
        %v1500 = vand.u32 %v1499, 4294901760
        %v1501 = vsub.f32 %v1499, %v1500
        %v1502 = vand.u32 %v1501, 4294901760
        %1503 = vmatpush1.xpose.msra.mxu0 %v1502
        %v1504 = vand.u32 %v287, 4294901760
        %v1505 = vsub.f32 %v287, %v1504
        %v1506 = vand.u32 %v1505, 4294901760
        %v1507 = vsub.f32 %v1505, %v1506
        %v1508 = vand.u32 %v1507, 4294901760
        %1509 = vmatprep.subr.mxu0 %v1508
        %v1510 = vand.u32 %v286, 4294901760
        %v1511 = vsub.f32 %v286, %v1510
        %v1512 = vand.u32 %v1511, 4294901760
        %v1513 = vsub.f32 %v1511, %v1512
        %v1514 = vand.u32 %v1513, 4294901760
        %1515 = vmatpush1.xpose.msra.mxu0 %v1514
        %v1516 = vand.u32 %v289, 4294901760
        %v1517 = vsub.f32 %v289, %v1516
        %v1518 = vand.u32 %v1517, 4294901760
        %v1519 = vsub.f32 %v1517, %v1518
        %v1520 = vand.u32 %v1519, 4294901760
        %1521 = vmatprep.subr.mxu0 %v1520
        %v1522 = vand.u32 %v288, 4294901760
        %v1523 = vsub.f32 %v288, %v1522
        %v1524 = vand.u32 %v1523, 4294901760
        %v1525 = vsub.f32 %v1523, %v1524
        %v1526 = vand.u32 %v1525, 4294901760
        %1527 = vmatpush1.xpose.msra.mxu0 %v1526
        %1528 = vmatprep.subr.mxu0 0.0
        %1529 = vmatpush1.xpose.msra.mxu0 0.0
        %1530 = vmatprep.subr.mxu0 0.0
        %1531 = vmatpush1.xpose.msra.mxu0 0.0
        %1532 = vmatprep.subr.mxu0 0.0
        %1533 = vmatpush1.xpose.msra.mxu0 0.0
        %1534 = vmatprep.subr.mxu0 0.0
        %1535 = vmatpush1.xpose.msra.mxu0 0.0
        %1536 = vmatprep.subr.mxu0 0.0
        %1537 = vmatpush1.xpose.msra.mxu0 0.0
        %1538 = vmatprep.subr.mxu0 0.0
        %1539 = vmatpush1.xpose.msra.mxu0 0.0
        %1540 = vmatprep.subr.mxu0 0.0
        %1541 = vmatpush1.xpose.msra.mxu0 0.0
        %1542 = vmatprep.subr.mxu0 0.0
        %1543 = vmatpush1.xpose.msra.mxu0 0.0
        %1544 = vmatprep.subr.mxu0 0.0
        %1545 = vmatpush1.xpose.msra.mxu0 0.0
        %1546 = vmatprep.subr.mxu0 0.0
        %1547 = vmatpush1.xpose.msra.mxu0 0.0
        %1548 = vmatprep.subr.mxu0 0.0
        %1549 = vmatpush1.xpose.msra.mxu0 0.0
        %1550 = vmatprep.subr.mxu0 0.0
        %1551 = vmatpush1.xpose.msra.mxu0 0.0
        %1552 = vmatprep.subr.mxu0 0.0
        %1553 = vmatpush1.xpose.msra.mxu0 0.0
        %1554 = vmatprep.subr.mxu0 0.0
        %1555 = vmatpush1.xpose.msra.mxu0 0.0
        %1556 = vmatprep.subr.mxu0 0.0
        %1557 = vmatpush1.xpose.msra.mxu0 0.0
        %1558 = vmatprep.subr.mxu0 0.0
        %1559 = vmatpush1.xpose.msra.mxu0 0.0
        %1560 = vmatprep.subr.mxu0 0.0
        %1561 = vmatpush1.xpose.msra.mxu0 0.0
        %1562 = vmatprep.subr.mxu0 0.0
        %1563 = vmatpush1.xpose.msra.mxu0 0.0
        %1564 = vmatprep.subr.mxu0 0.0
        %1565 = vmatpush1.xpose.msra.mxu0 0.0
        %1566 = vmatprep.subr.mxu0 0.0
        %1567 = vmatpush1.xpose.msra.mxu0 0.0
        %1568 = vmatprep.subr.mxu0 0.0
        %1569 = vmatpush1.xpose.msra.mxu0 0.0
        %1570 = vmatprep.subr.mxu0 0.0
        %1571 = vmatpush1.xpose.msra.mxu0 0.0
        %1572 = vmatprep.subr.mxu0 0.0
        %1573 = vmatpush1.xpose.msra.mxu0 0.0
        %1574 = vmatprep.subr.mxu0 0.0
        %1575 = vmatpush1.xpose.msra.mxu0 0.0
        %v1576 = vand.u32 %v1280, 4294901760
        %1577 = vmatprep.mubr.f32.mxu0 %v1576
        %v1578 = vand.u32 %v1279, 4294901760
        %1579 = vmatmul.mubr.f32.gmra.mrb[0].mxu0 %v1578
        %v1580 = vpop.f32.mrb[0].mxu0
        %v1581 = vadd.f32 %v1384, %v1580
        %v1582 = vpop.f32.mrb[0].mxu0
        %v1583 = vand.u32 %v1282, 4294901760
        %1584 = vmatprep.mubr.f32.mxu0 %v1583
        %v1585 = vand.u32 %v1281, 4294901760
        %1586 = vmatmul.mubr.f32.gmra.mrb[0].mxu0 %v1585
        %v1587 = vpop.f32.mrb[0].mxu0
        %v1588 = vadd.f32 %v1399, %v1587
        %v1589 = vpop.f32.mrb[0].mxu0
        %v1590 = vand.u32 %v1284, 4294901760
        %1591 = vmatprep.mubr.f32.mxu0 %v1590
        %v1592 = vand.u32 %v1283, 4294901760
        %1593 = vmatmul.mubr.f32.gmra.mrb[0].mxu0 %v1592
        %v1594 = vpop.f32.mrb[0].mxu0
        %v1595 = vadd.f32 %v1414, %v1594
        %v1596 = vpop.f32.mrb[0].mxu0
        %v1597 = vand.u32 %v1286, 4294901760
        %1598 = vmatprep.mubr.f32.mxu0 %v1597
        %v1599 = vand.u32 %v1285, 4294901760
        %1600 = vmatmul.mubr.f32.gmra.mrb[0].mxu0 %v1599
        %v1601 = vpop.f32.mrb[0].mxu0
        %v1602 = vadd.f32 %v1429, %v1601
        %v1603 = vpop.f32.mrb[0].mxu0
        %1604 = vdwg.mxu0
        %v1605 = vand.u32 %v275, 4294901760
        %v1606 = vsub.f32 %v275, %v1605
        %1607 = vmatprep.subr.mxu0 %v1606
        %v1608 = vand.u32 %v274, 4294901760
        %v1609 = vsub.f32 %v274, %v1608
        %1610 = vmatpush1.xpose.msra.mxu0 %v1609
        %v1611 = vand.u32 %v277, 4294901760
        %v1612 = vsub.f32 %v277, %v1611
        %1613 = vmatprep.subr.mxu0 %v1612
        %v1614 = vand.u32 %v276, 4294901760
        %v1615 = vsub.f32 %v276, %v1614
        %1616 = vmatpush1.xpose.msra.mxu0 %v1615
        %v1617 = vand.u32 %v279, 4294901760
        %v1618 = vsub.f32 %v279, %v1617
        %1619 = vmatprep.subr.mxu0 %v1618
        %v1620 = vand.u32 %v278, 4294901760
        %v1621 = vsub.f32 %v278, %v1620
        %1622 = vmatpush1.xpose.msra.mxu0 %v1621
        %v1623 = vand.u32 %v281, 4294901760
        %v1624 = vsub.f32 %v281, %v1623
        %1625 = vmatprep.subr.mxu0 %v1624
        %v1626 = vand.u32 %v280, 4294901760
        %v1627 = vsub.f32 %v280, %v1626
        %1628 = vmatpush1.xpose.msra.mxu0 %v1627
        %v1629 = vand.u32 %v283, 4294901760
        %v1630 = vsub.f32 %v283, %v1629
        %1631 = vmatprep.subr.mxu0 %v1630
        %v1632 = vand.u32 %v282, 4294901760
        %v1633 = vsub.f32 %v282, %v1632
        %1634 = vmatpush1.xpose.msra.mxu0 %v1633
        %v1635 = vand.u32 %v285, 4294901760
        %v1636 = vsub.f32 %v285, %v1635
        %1637 = vmatprep.subr.mxu0 %v1636
        %v1638 = vand.u32 %v284, 4294901760
        %v1639 = vsub.f32 %v284, %v1638
        %1640 = vmatpush1.xpose.msra.mxu0 %v1639
        %v1641 = vand.u32 %v287, 4294901760
        %v1642 = vsub.f32 %v287, %v1641
        %1643 = vmatprep.subr.mxu0 %v1642
        %v1644 = vand.u32 %v286, 4294901760
        %v1645 = vsub.f32 %v286, %v1644
        %1646 = vmatpush1.xpose.msra.mxu0 %v1645
        %v1647 = vand.u32 %v289, 4294901760
        %v1648 = vsub.f32 %v289, %v1647
        %1649 = vmatprep.subr.mxu0 %v1648
        %v1650 = vand.u32 %v288, 4294901760
        %v1651 = vsub.f32 %v288, %v1650
        %1652 = vmatpush1.xpose.msra.mxu0 %v1651
        %1653 = vmatprep.subr.mxu0 0.0
        %1654 = vmatpush1.xpose.msra.mxu0 0.0
        %1655 = vmatprep.subr.mxu0 0.0
        %1656 = vmatpush1.xpose.msra.mxu0 0.0
        %1657 = vmatprep.subr.mxu0 0.0
        %1658 = vmatpush1.xpose.msra.mxu0 0.0
        %1659 = vmatprep.subr.mxu0 0.0
        %1660 = vmatpush1.xpose.msra.mxu0 0.0
        %1661 = vmatprep.subr.mxu0 0.0
        %1662 = vmatpush1.xpose.msra.mxu0 0.0
        %1663 = vmatprep.subr.mxu0 0.0
        %1664 = vmatpush1.xpose.msra.mxu0 0.0
        %1665 = vmatprep.subr.mxu0 0.0
        %1666 = vmatpush1.xpose.msra.mxu0 0.0
        %1667 = vmatprep.subr.mxu0 0.0
        %1668 = vmatpush1.xpose.msra.mxu0 0.0
        %1669 = vmatprep.subr.mxu0 0.0
        %1670 = vmatpush1.xpose.msra.mxu0 0.0
        %1671 = vmatprep.subr.mxu0 0.0
        %1672 = vmatpush1.xpose.msra.mxu0 0.0
        %1673 = vmatprep.subr.mxu0 0.0
        %1674 = vmatpush1.xpose.msra.mxu0 0.0
        %1675 = vmatprep.subr.mxu0 0.0
        %1676 = vmatpush1.xpose.msra.mxu0 0.0
        %1677 = vmatprep.subr.mxu0 0.0
        %1678 = vmatpush1.xpose.msra.mxu0 0.0
        %1679 = vmatprep.subr.mxu0 0.0
        %1680 = vmatpush1.xpose.msra.mxu0 0.0
        %1681 = vmatprep.subr.mxu0 0.0
        %1682 = vmatpush1.xpose.msra.mxu0 0.0
        %1683 = vmatprep.subr.mxu0 0.0
        %1684 = vmatpush1.xpose.msra.mxu0 0.0
        %1685 = vmatprep.subr.mxu0 0.0
        %1686 = vmatpush1.xpose.msra.mxu0 0.0
        %1687 = vmatprep.subr.mxu0 0.0
        %1688 = vmatpush1.xpose.msra.mxu0 0.0
        %1689 = vmatprep.subr.mxu0 0.0
        %1690 = vmatpush1.xpose.msra.mxu0 0.0
        %1691 = vmatprep.subr.mxu0 0.0
        %1692 = vmatpush1.xpose.msra.mxu0 0.0
        %1693 = vmatprep.subr.mxu0 0.0
        %1694 = vmatpush1.xpose.msra.mxu0 0.0
        %1695 = vmatprep.subr.mxu0 0.0
        %1696 = vmatpush1.xpose.msra.mxu0 0.0
        %1697 = vmatprep.subr.mxu0 0.0
        %1698 = vmatpush1.xpose.msra.mxu0 0.0
        %1699 = vmatprep.subr.mxu0 0.0
        %1700 = vmatpush1.xpose.msra.mxu0 0.0
        %v1701 = vand.u32 %v1280, 4294901760
        %v1702 = vsub.f32 %v1280, %v1701
        %1703 = vmatprep.mubr.f32.mxu0 %v1702
        %v1704 = vand.u32 %v1279, 4294901760
        %v1705 = vsub.f32 %v1279, %v1704
        %1706 = vmatmul.mubr.f32.gmra.mrb[0].mxu0 %v1705
        %v1707 = vpop.f32.mrb[0].mxu0
        %v1708 = vadd.f32 %v1581, %v1707
        %v1709 = vpop.f32.mrb[0].mxu0
        %v1710 = vand.u32 %v1282, 4294901760
        %v1711 = vsub.f32 %v1282, %v1710
        %1712 = vmatprep.mubr.f32.mxu0 %v1711
        %v1713 = vand.u32 %v1281, 4294901760
        %v1714 = vsub.f32 %v1281, %v1713
        %1715 = vmatmul.mubr.f32.gmra.mrb[0].mxu0 %v1714
        %v1716 = vpop.f32.mrb[0].mxu0
        %v1717 = vadd.f32 %v1588, %v1716
        %v1718 = vpop.f32.mrb[0].mxu0
        %v1719 = vand.u32 %v1284, 4294901760
        %v1720 = vsub.f32 %v1284, %v1719
        %1721 = vmatprep.mubr.f32.mxu0 %v1720
        %v1722 = vand.u32 %v1283, 4294901760
        %v1723 = vsub.f32 %v1283, %v1722
        %1724 = vmatmul.mubr.f32.gmra.mrb[0].mxu0 %v1723
        %v1725 = vpop.f32.mrb[0].mxu0
        %v1726 = vadd.f32 %v1595, %v1725
        %v1727 = vpop.f32.mrb[0].mxu0
        %v1728 = vand.u32 %v1286, 4294901760
        %v1729 = vsub.f32 %v1286, %v1728
        %1730 = vmatprep.mubr.f32.mxu0 %v1729
        %v1731 = vand.u32 %v1285, 4294901760
        %v1732 = vsub.f32 %v1285, %v1731
        %1733 = vmatmul.mubr.f32.gmra.mrb[0].mxu0 %v1732
        %v1734 = vpop.f32.mrb[0].mxu0
        %v1735 = vadd.f32 %v1602, %v1734
        %v1736 = vpop.f32.mrb[0].mxu0
        %1737 = vdwg.mxu0
        %v1738 = vand.u32 %v275, 4294901760
        %1739 = vmatprep.subr.mxu0 %v1738
        %v1740 = vand.u32 %v274, 4294901760
        %1741 = vmatpush1.xpose.msra.mxu0 %v1740
        %v1742 = vand.u32 %v277, 4294901760
        %1743 = vmatprep.subr.mxu0 %v1742
        %v1744 = vand.u32 %v276, 4294901760
        %1745 = vmatpush1.xpose.msra.mxu0 %v1744
        %v1746 = vand.u32 %v279, 4294901760
        %1747 = vmatprep.subr.mxu0 %v1746
        %v1748 = vand.u32 %v278, 4294901760
        %1749 = vmatpush1.xpose.msra.mxu0 %v1748
        %v1750 = vand.u32 %v281, 4294901760
        %1751 = vmatprep.subr.mxu0 %v1750
        %v1752 = vand.u32 %v280, 4294901760
        %1753 = vmatpush1.xpose.msra.mxu0 %v1752
        %v1754 = vand.u32 %v283, 4294901760
        %1755 = vmatprep.subr.mxu0 %v1754
        %v1756 = vand.u32 %v282, 4294901760
        %1757 = vmatpush1.xpose.msra.mxu0 %v1756
        %v1758 = vand.u32 %v285, 4294901760
        %1759 = vmatprep.subr.mxu0 %v1758
        %v1760 = vand.u32 %v284, 4294901760
        %1761 = vmatpush1.xpose.msra.mxu0 %v1760
        %v1762 = vand.u32 %v287, 4294901760
        %1763 = vmatprep.subr.mxu0 %v1762
        %v1764 = vand.u32 %v286, 4294901760
        %1765 = vmatpush1.xpose.msra.mxu0 %v1764
        %v1766 = vand.u32 %v289, 4294901760
        %1767 = vmatprep.subr.mxu0 %v1766
        %v1768 = vand.u32 %v288, 4294901760
        %1769 = vmatpush1.xpose.msra.mxu0 %v1768
        %1770 = vmatprep.subr.mxu0 0.0
        %1771 = vmatpush1.xpose.msra.mxu0 0.0
        %1772 = vmatprep.subr.mxu0 0.0
        %1773 = vmatpush1.xpose.msra.mxu0 0.0
        %1774 = vmatprep.subr.mxu0 0.0
        %1775 = vmatpush1.xpose.msra.mxu0 0.0
        %1776 = vmatprep.subr.mxu0 0.0
        %1777 = vmatpush1.xpose.msra.mxu0 0.0
        %1778 = vmatprep.subr.mxu0 0.0
        %1779 = vmatpush1.xpose.msra.mxu0 0.0
        %1780 = vmatprep.subr.mxu0 0.0
        %1781 = vmatpush1.xpose.msra.mxu0 0.0
        %1782 = vmatprep.subr.mxu0 0.0
        %1783 = vmatpush1.xpose.msra.mxu0 0.0
        %1784 = vmatprep.subr.mxu0 0.0
        %1785 = vmatpush1.xpose.msra.mxu0 0.0
        %1786 = vmatprep.subr.mxu0 0.0
        %1787 = vmatpush1.xpose.msra.mxu0 0.0
        %1788 = vmatprep.subr.mxu0 0.0
        %1789 = vmatpush1.xpose.msra.mxu0 0.0
        %1790 = vmatprep.subr.mxu0 0.0
        %1791 = vmatpush1.xpose.msra.mxu0 0.0
        %1792 = vmatprep.subr.mxu0 0.0
        %1793 = vmatpush1.xpose.msra.mxu0 0.0
        %1794 = vmatprep.subr.mxu0 0.0
        %1795 = vmatpush1.xpose.msra.mxu0 0.0
        %1796 = vmatprep.subr.mxu0 0.0
        %1797 = vmatpush1.xpose.msra.mxu0 0.0
        %1798 = vmatprep.subr.mxu0 0.0
        %1799 = vmatpush1.xpose.msra.mxu0 0.0
        %1800 = vmatprep.subr.mxu0 0.0
        %1801 = vmatpush1.xpose.msra.mxu0 0.0
        %1802 = vmatprep.subr.mxu0 0.0
        %1803 = vmatpush1.xpose.msra.mxu0 0.0
        %1804 = vmatprep.subr.mxu0 0.0
        %1805 = vmatpush1.xpose.msra.mxu0 0.0
        %1806 = vmatprep.subr.mxu0 0.0
        %1807 = vmatpush1.xpose.msra.mxu0 0.0
        %1808 = vmatprep.subr.mxu0 0.0
        %1809 = vmatpush1.xpose.msra.mxu0 0.0
        %1810 = vmatprep.subr.mxu0 0.0
        %1811 = vmatpush1.xpose.msra.mxu0 0.0
        %1812 = vmatprep.subr.mxu0 0.0
        %1813 = vmatpush1.xpose.msra.mxu0 0.0
        %1814 = vmatprep.subr.mxu0 0.0
        %1815 = vmatpush1.xpose.msra.mxu0 0.0
        %1816 = vmatprep.subr.mxu0 0.0
        %1817 = vmatpush1.xpose.msra.mxu0 0.0
        %v1818 = vand.u32 %v1280, 4294901760
        %v1819 = vsub.f32 %v1280, %v1818
        %v1820 = vand.u32 %v1819, 4294901760
        %1821 = vmatprep.mubr.f32.mxu0 %v1820
        %v1822 = vand.u32 %v1279, 4294901760
        %v1823 = vsub.f32 %v1279, %v1822
        %v1824 = vand.u32 %v1823, 4294901760
        %1825 = vmatmul.mubr.f32.gmra.mrb[0].mxu0 %v1824
        %v1826 = vpop.f32.mrb[0].mxu0
        %v1827 = vadd.f32 %v1708, %v1826
        %v1828 = vpop.f32.mrb[0].mxu0
        %v1829 = vand.u32 %v1282, 4294901760
        %v1830 = vsub.f32 %v1282, %v1829
        %v1831 = vand.u32 %v1830, 4294901760
        %1832 = vmatprep.mubr.f32.mxu0 %v1831
        %v1833 = vand.u32 %v1281, 4294901760
        %v1834 = vsub.f32 %v1281, %v1833
        %v1835 = vand.u32 %v1834, 4294901760
        %1836 = vmatmul.mubr.f32.gmra.mrb[0].mxu0 %v1835
        %v1837 = vpop.f32.mrb[0].mxu0
        %v1838 = vadd.f32 %v1717, %v1837
        %v1839 = vpop.f32.mrb[0].mxu0
        %v1840 = vand.u32 %v1284, 4294901760
        %v1841 = vsub.f32 %v1284, %v1840
        %v1842 = vand.u32 %v1841, 4294901760
        %1843 = vmatprep.mubr.f32.mxu0 %v1842
        %v1844 = vand.u32 %v1283, 4294901760
        %v1845 = vsub.f32 %v1283, %v1844
        %v1846 = vand.u32 %v1845, 4294901760
        %1847 = vmatmul.mubr.f32.gmra.mrb[0].mxu0 %v1846
        %v1848 = vpop.f32.mrb[0].mxu0
        %v1849 = vadd.f32 %v1726, %v1848
        %v1850 = vpop.f32.mrb[0].mxu0
        %v1851 = vand.u32 %v1286, 4294901760
        %v1852 = vsub.f32 %v1286, %v1851
        %v1853 = vand.u32 %v1852, 4294901760
        %1854 = vmatprep.mubr.f32.mxu0 %v1853
        %v1855 = vand.u32 %v1285, 4294901760
        %v1856 = vsub.f32 %v1285, %v1855
        %v1857 = vand.u32 %v1856, 4294901760
        %1858 = vmatmul.mubr.f32.gmra.mrb[0].mxu0 %v1857
        %v1859 = vpop.f32.mrb[0].mxu0
        %v1860 = vadd.f32 %v1735, %v1859
        %v1861 = vpop.f32.mrb[0].mxu0
        %1862 = vdwg.mxu0
        %v1863 = vand.u32 %v275, 4294901760
        %v1864 = vsub.f32 %v275, %v1863
        %v1865 = vand.u32 %v1864, 4294901760
        %1866 = vmatprep.subr.mxu0 %v1865
        %v1867 = vand.u32 %v274, 4294901760
        %v1868 = vsub.f32 %v274, %v1867
        %v1869 = vand.u32 %v1868, 4294901760
        %1870 = vmatpush1.xpose.msra.mxu0 %v1869
        %v1871 = vand.u32 %v277, 4294901760
        %v1872 = vsub.f32 %v277, %v1871
        %v1873 = vand.u32 %v1872, 4294901760
        %1874 = vmatprep.subr.mxu0 %v1873
        %v1875 = vand.u32 %v276, 4294901760
        %v1876 = vsub.f32 %v276, %v1875
        %v1877 = vand.u32 %v1876, 4294901760
        %1878 = vmatpush1.xpose.msra.mxu0 %v1877
        %v1879 = vand.u32 %v279, 4294901760
        %v1880 = vsub.f32 %v279, %v1879
        %v1881 = vand.u32 %v1880, 4294901760
        %1882 = vmatprep.subr.mxu0 %v1881
        %v1883 = vand.u32 %v278, 4294901760
        %v1884 = vsub.f32 %v278, %v1883
        %v1885 = vand.u32 %v1884, 4294901760
        %1886 = vmatpush1.xpose.msra.mxu0 %v1885
        %v1887 = vand.u32 %v281, 4294901760
        %v1888 = vsub.f32 %v281, %v1887
        %v1889 = vand.u32 %v1888, 4294901760
        %1890 = vmatprep.subr.mxu0 %v1889
        %v1891 = vand.u32 %v280, 4294901760
        %v1892 = vsub.f32 %v280, %v1891
        %v1893 = vand.u32 %v1892, 4294901760
        %1894 = vmatpush1.xpose.msra.mxu0 %v1893
        %v1895 = vand.u32 %v283, 4294901760
        %v1896 = vsub.f32 %v283, %v1895
        %v1897 = vand.u32 %v1896, 4294901760
        %1898 = vmatprep.subr.mxu0 %v1897
        %v1899 = vand.u32 %v282, 4294901760
        %v1900 = vsub.f32 %v282, %v1899
        %v1901 = vand.u32 %v1900, 4294901760
        %1902 = vmatpush1.xpose.msra.mxu0 %v1901
        %v1903 = vand.u32 %v285, 4294901760
        %v1904 = vsub.f32 %v285, %v1903
        %v1905 = vand.u32 %v1904, 4294901760
        %1906 = vmatprep.subr.mxu0 %v1905
        %v1907 = vand.u32 %v284, 4294901760
        %v1908 = vsub.f32 %v284, %v1907
        %v1909 = vand.u32 %v1908, 4294901760
        %1910 = vmatpush1.xpose.msra.mxu0 %v1909
        %v1911 = vand.u32 %v287, 4294901760
        %v1912 = vsub.f32 %v287, %v1911
        %v1913 = vand.u32 %v1912, 4294901760
        %1914 = vmatprep.subr.mxu0 %v1913
        %v1915 = vand.u32 %v286, 4294901760
        %v1916 = vsub.f32 %v286, %v1915
        %v1917 = vand.u32 %v1916, 4294901760
        %1918 = vmatpush1.xpose.msra.mxu0 %v1917
        %v1919 = vand.u32 %v289, 4294901760
        %v1920 = vsub.f32 %v289, %v1919
        %v1921 = vand.u32 %v1920, 4294901760
        %1922 = vmatprep.subr.mxu0 %v1921
        %v1923 = vand.u32 %v288, 4294901760
        %v1924 = vsub.f32 %v288, %v1923
        %v1925 = vand.u32 %v1924, 4294901760
        %1926 = vmatpush1.xpose.msra.mxu0 %v1925
        %1927 = vmatprep.subr.mxu0 0.0
        %1928 = vmatpush1.xpose.msra.mxu0 0.0
        %1929 = vmatprep.subr.mxu0 0.0
        %1930 = vmatpush1.xpose.msra.mxu0 0.0
        %1931 = vmatprep.subr.mxu0 0.0
        %1932 = vmatpush1.xpose.msra.mxu0 0.0
        %1933 = vmatprep.subr.mxu0 0.0
        %1934 = vmatpush1.xpose.msra.mxu0 0.0
        %1935 = vmatprep.subr.mxu0 0.0
        %1936 = vmatpush1.xpose.msra.mxu0 0.0
        %1937 = vmatprep.subr.mxu0 0.0
        %1938 = vmatpush1.xpose.msra.mxu0 0.0
        %1939 = vmatprep.subr.mxu0 0.0
        %1940 = vmatpush1.xpose.msra.mxu0 0.0
        %1941 = vmatprep.subr.mxu0 0.0
        %1942 = vmatpush1.xpose.msra.mxu0 0.0
        %1943 = vmatprep.subr.mxu0 0.0
        %1944 = vmatpush1.xpose.msra.mxu0 0.0
        %1945 = vmatprep.subr.mxu0 0.0
        %1946 = vmatpush1.xpose.msra.mxu0 0.0
        %1947 = vmatprep.subr.mxu0 0.0
        %1948 = vmatpush1.xpose.msra.mxu0 0.0
        %1949 = vmatprep.subr.mxu0 0.0
        %1950 = vmatpush1.xpose.msra.mxu0 0.0
        %1951 = vmatprep.subr.mxu0 0.0
        %1952 = vmatpush1.xpose.msra.mxu0 0.0
        %1953 = vmatprep.subr.mxu0 0.0
        %1954 = vmatpush1.xpose.msra.mxu0 0.0
        %1955 = vmatprep.subr.mxu0 0.0
        %1956 = vmatpush1.xpose.msra.mxu0 0.0
        %1957 = vmatprep.subr.mxu0 0.0
        %1958 = vmatpush1.xpose.msra.mxu0 0.0
        %1959 = vmatprep.subr.mxu0 0.0
        %1960 = vmatpush1.xpose.msra.mxu0 0.0
        %1961 = vmatprep.subr.mxu0 0.0
        %1962 = vmatpush1.xpose.msra.mxu0 0.0
        %1963 = vmatprep.subr.mxu0 0.0
        %1964 = vmatpush1.xpose.msra.mxu0 0.0
        %1965 = vmatprep.subr.mxu0 0.0
        %1966 = vmatpush1.xpose.msra.mxu0 0.0
        %1967 = vmatprep.subr.mxu0 0.0
        %1968 = vmatpush1.xpose.msra.mxu0 0.0
        %1969 = vmatprep.subr.mxu0 0.0
        %1970 = vmatpush1.xpose.msra.mxu0 0.0
        %1971 = vmatprep.subr.mxu0 0.0
        %1972 = vmatpush1.xpose.msra.mxu0 0.0
        %1973 = vmatprep.subr.mxu0 0.0
        %1974 = vmatpush1.xpose.msra.mxu0 0.0
        %v1975 = vand.u32 %v1280, 4294901760
        %1976 = vmatprep.mubr.f32.mxu0 %v1975
        %v1977 = vand.u32 %v1279, 4294901760
        %1978 = vmatmul.mubr.f32.gmra.mrb[0].mxu0 %v1977
        %v1979 = vpop.f32.mrb[0].mxu0
        %v1980 = vadd.f32 %v1827, %v1979
        %v1981 = vpop.f32.mrb[0].mxu0
        %v1982 = vand.u32 %v1282, 4294901760
        %1983 = vmatprep.mubr.f32.mxu0 %v1982
        %v1984 = vand.u32 %v1281, 4294901760
        %1985 = vmatmul.mubr.f32.gmra.mrb[0].mxu0 %v1984
        %v1986 = vpop.f32.mrb[0].mxu0
        %v1987 = vadd.f32 %v1838, %v1986
        %v1988 = vpop.f32.mrb[0].mxu0
        %v1989 = vand.u32 %v1284, 4294901760
        %1990 = vmatprep.mubr.f32.mxu0 %v1989
        %v1991 = vand.u32 %v1283, 4294901760
        %1992 = vmatmul.mubr.f32.gmra.mrb[0].mxu0 %v1991
        %v1993 = vpop.f32.mrb[0].mxu0
        %v1994 = vadd.f32 %v1849, %v1993
        %v1995 = vpop.f32.mrb[0].mxu0
        %v1996 = vand.u32 %v1286, 4294901760
        %1997 = vmatprep.mubr.f32.mxu0 %v1996
        %v1998 = vand.u32 %v1285, 4294901760
        %1999 = vmatmul.mubr.f32.gmra.mrb[0].mxu0 %v1998
        %v2000 = vpop.f32.mrb[0].mxu0
        %v2001 = vadd.f32 %v1860, %v2000
        %v2002 = vpop.f32.mrb[0].mxu0
        %2003 = vdwg.mxu0
        %v2004 = vand.u32 %v275, 4294901760
        %2005 = vmatprep.subr.mxu0 %v2004
        %v2006 = vand.u32 %v274, 4294901760
        %2007 = vmatpush1.xpose.msra.mxu0 %v2006
        %v2008 = vand.u32 %v277, 4294901760
        %2009 = vmatprep.subr.mxu0 %v2008
        %v2010 = vand.u32 %v276, 4294901760
        %2011 = vmatpush1.xpose.msra.mxu0 %v2010
        %v2012 = vand.u32 %v279, 4294901760
        %2013 = vmatprep.subr.mxu0 %v2012
        %v2014 = vand.u32 %v278, 4294901760
        %2015 = vmatpush1.xpose.msra.mxu0 %v2014
        %v2016 = vand.u32 %v281, 4294901760
        %2017 = vmatprep.subr.mxu0 %v2016
        %v2018 = vand.u32 %v280, 4294901760
        %2019 = vmatpush1.xpose.msra.mxu0 %v2018
        %v2020 = vand.u32 %v283, 4294901760
        %2021 = vmatprep.subr.mxu0 %v2020
        %v2022 = vand.u32 %v282, 4294901760
        %2023 = vmatpush1.xpose.msra.mxu0 %v2022
        %v2024 = vand.u32 %v285, 4294901760
        %2025 = vmatprep.subr.mxu0 %v2024
        %v2026 = vand.u32 %v284, 4294901760
        %2027 = vmatpush1.xpose.msra.mxu0 %v2026
        %v2028 = vand.u32 %v287, 4294901760
        %2029 = vmatprep.subr.mxu0 %v2028
        %v2030 = vand.u32 %v286, 4294901760
        %2031 = vmatpush1.xpose.msra.mxu0 %v2030
        %v2032 = vand.u32 %v289, 4294901760
        %2033 = vmatprep.subr.mxu0 %v2032
        %v2034 = vand.u32 %v288, 4294901760
        %2035 = vmatpush1.xpose.msra.mxu0 %v2034
        %2036 = vmatprep.subr.mxu0 0.0
        %2037 = vmatpush1.xpose.msra.mxu0 0.0
        %2038 = vmatprep.subr.mxu0 0.0
        %2039 = vmatpush1.xpose.msra.mxu0 0.0
        %2040 = vmatprep.subr.mxu0 0.0
        %2041 = vmatpush1.xpose.msra.mxu0 0.0
        %2042 = vmatprep.subr.mxu0 0.0
        %2043 = vmatpush1.xpose.msra.mxu0 0.0
        %2044 = vmatprep.subr.mxu0 0.0
        %2045 = vmatpush1.xpose.msra.mxu0 0.0
        %2046 = vmatprep.subr.mxu0 0.0
        %2047 = vmatpush1.xpose.msra.mxu0 0.0
        %2048 = vmatprep.subr.mxu0 0.0
        %2049 = vmatpush1.xpose.msra.mxu0 0.0
        %2050 = vmatprep.subr.mxu0 0.0
        %2051 = vmatpush1.xpose.msra.mxu0 0.0
        %2052 = vmatprep.subr.mxu0 0.0
        %2053 = vmatpush1.xpose.msra.mxu0 0.0
        %2054 = vmatprep.subr.mxu0 0.0
        %2055 = vmatpush1.xpose.msra.mxu0 0.0
        %2056 = vmatprep.subr.mxu0 0.0
        %2057 = vmatpush1.xpose.msra.mxu0 0.0
        %2058 = vmatprep.subr.mxu0 0.0
        %2059 = vmatpush1.xpose.msra.mxu0 0.0
        %2060 = vmatprep.subr.mxu0 0.0
        %2061 = vmatpush1.xpose.msra.mxu0 0.0
        %2062 = vmatprep.subr.mxu0 0.0
        %2063 = vmatpush1.xpose.msra.mxu0 0.0
        %2064 = vmatprep.subr.mxu0 0.0
        %2065 = vmatpush1.xpose.msra.mxu0 0.0
        %2066 = vmatprep.subr.mxu0 0.0
        %2067 = vmatpush1.xpose.msra.mxu0 0.0
        %2068 = vmatprep.subr.mxu0 0.0
        %2069 = vmatpush1.xpose.msra.mxu0 0.0
        %2070 = vmatprep.subr.mxu0 0.0
        %2071 = vmatpush1.xpose.msra.mxu0 0.0
        %2072 = vmatprep.subr.mxu0 0.0
        %2073 = vmatpush1.xpose.msra.mxu0 0.0
        %2074 = vmatprep.subr.mxu0 0.0
        %2075 = vmatpush1.xpose.msra.mxu0 0.0
        %2076 = vmatprep.subr.mxu0 0.0
        %2077 = vmatpush1.xpose.msra.mxu0 0.0
        %2078 = vmatprep.subr.mxu0 0.0
        %2079 = vmatpush1.xpose.msra.mxu0 0.0
        %2080 = vmatprep.subr.mxu0 0.0
        %2081 = vmatpush1.xpose.msra.mxu0 0.0
        %2082 = vmatprep.subr.mxu0 0.0
        %2083 = vmatpush1.xpose.msra.mxu0 0.0
        %v2084 = vand.u32 %v1280, 4294901760
        %2085 = vmatprep.mubr.f32.mxu0 %v2084
        %v2086 = vand.u32 %v1279, 4294901760
        %2087 = vmatmul.mubr.f32.gmra.mrb[0].mxu0 %v2086
        %v2088 = vpop.f32.mrb[0].mxu0
        %v2089 = vadd.f32 %v1980, %v2088
        %v2090 = vpop.f32.mrb[0].mxu0
        %v2091 = vand.u32 %v1282, 4294901760
        %2092 = vmatprep.mubr.f32.mxu0 %v2091
        %v2093 = vand.u32 %v1281, 4294901760
        %2094 = vmatmul.mubr.f32.gmra.mrb[0].mxu0 %v2093
        %v2095 = vpop.f32.mrb[0].mxu0
        %v2096 = vadd.f32 %v1987, %v2095
        %v2097 = vpop.f32.mrb[0].mxu0
        %v2098 = vand.u32 %v1284, 4294901760
        %2099 = vmatprep.mubr.f32.mxu0 %v2098
        %v2100 = vand.u32 %v1283, 4294901760
        %2101 = vmatmul.mubr.f32.gmra.mrb[0].mxu0 %v2100
        %v2102 = vpop.f32.mrb[0].mxu0
        %v2103 = vadd.f32 %v1994, %v2102
        %v2104 = vpop.f32.mrb[0].mxu0
        %v2105 = vand.u32 %v1286, 4294901760
        %2106 = vmatprep.mubr.f32.mxu0 %v2105
        %v2107 = vand.u32 %v1285, 4294901760
        %2108 = vmatmul.mubr.f32.gmra.mrb[0].mxu0 %v2107
        %v2109 = vpop.f32.mrb[0].mxu0
        %v2110 = vadd.f32 %v2001, %v2109
        %v2111 = vpop.f32.mrb[0].mxu0
        %2112 = vdwg.mxu0
        %v2113 = vadd.f32 %v1287, %v2089
        %v2114 = vadd.f32 %v1288, %v2096
        %v2115 = vadd.f32 %v1289, %v2103
        %v2116 = vadd.f32 %v1290, %v2110
        %2117 = vst.msk [vmem:[#allocation2] sm:$0xff] %vm294, %v2113
        %2118 = vst.msk [vmem:[#allocation2 + $0x8] sm:$0xff] %vm294, %v2114
        %2119 = vst.msk [vmem:[#allocation2 + $0x10] sm:$0xff] %vm294, %v2115
        %2120 = vst.msk [vmem:[#allocation2 + $0x18] sm:$0xff] %vm294, %v2116
        %v2121 = vld [vmem:[#allocation3] sm:$0xff]
        %v2122 = vld [vmem:[#allocation3 + $0x8] sm:$0xff]
        %v2123 = vld [vmem:[#allocation3 + $0x10] sm:$0xff]
        %v2124 = vld [vmem:[#allocation3 + $0x18] sm:$0xff]
        %v2125 = vadd.f32 %v1279, %v1280
        %2126 = vadd.xlane.f32.xlu0 %v2125
        %v2127 = vpop.xlane.xlu0 %2126
        %v2128 = vadd.f32 %v1281, %v1282
        %2129 = vadd.xlane.f32.xlu0 %v2128
        %v2130 = vpop.xlane.xlu0 %2129
        %v2131 = vadd.f32 %v1283, %v1284
        %2132 = vadd.xlane.f32.xlu0 %v2131
        %v2133 = vpop.xlane.xlu0 %2132
        %v2134 = vadd.f32 %v1285, %v1286
        %2135 = vadd.xlane.f32.xlu0 %v2134
        %v2136 = vpop.xlane.xlu0 %2135
        %v2137 = vadd.f32 %v2121, %v2127
        %v2138 = vadd.f32 %v2122, %v2130
        %v2139 = vadd.f32 %v2123, %v2133
        %v2140 = vadd.f32 %v2124, %v2136
        %vm2141 = vcmask 7168
        %2142 = vst.msk [vmem:[#allocation3] sm:$0xff] %vm2141, %v2137
        %2143 = vst.msk [vmem:[#allocation3 + $0x8] sm:$0xff] %vm2141, %v2138
        %2144 = vst.msk [vmem:[#allocation3 + $0x10] sm:$0xff] %vm2141, %v2139
        %2145 = vst.msk [vmem:[#allocation3 + $0x18] sm:$0xff] %vm2141, %v2140
        %p2146 = scmp.eq.s32.totalorder %s27, 3
        // Predicated region
        $region49: #{tpu_custom_call.1} parent=39 // pred_check
          %p2147 = pneg %p2146
        $region50: #{tpu_custom_call.1} parent=39 // pred_check_branch
          %2149 = sbr.rel (%p2147) target = $region52
        $region51: #{tpu_custom_call.1} parent=39 // pred_region
          %v2150 = vld [vmem:[#allocation2] sm:$0xff]
          %v2151 = vld [vmem:[#allocation2 + $0x8] sm:$0xff]
          %v2152 = vld [vmem:[#allocation2 + $0x10] sm:$0xff]
          %v2153 = vld [vmem:[#allocation2 + $0x18] sm:$0xff]
          %v2154 = vld [vmem:[#allocation3] sm:$0xff]
          %v2155 = vld [vmem:[#allocation3 + $0x8] sm:$0xff]
          %v2156 = vld [vmem:[#allocation3 + $0x10] sm:$0xff]
          %v2157 = vld [vmem:[#allocation3 + $0x18] sm:$0xff]
          %v2158 = vld [vmem:[%s2] sm:$0xff]
          %v2159 = vld [vmem:[%s2 + $0x8] sm:$0xff]
          %v2160 = vld [vmem:[%s2 + $0x10] sm:$0xff]
          %v2161 = vld [vmem:[%s2 + $0x18] sm:$0xff]
          %2163 = vset.pattern.permute.xlu0 0
          %2164 = vperm.xlu0 %2163, %v2154
          %v2165 = vpop.permute.xlu0 %2164
          %2168 = vset.pattern.permute.xlu0 0
          %2169 = vperm.xlu0 %2168, %v2155
          %v2170 = vpop.permute.xlu0 %2169
          %2173 = vset.pattern.permute.xlu0 0
          %2174 = vperm.xlu0 %2173, %v2156
          %v2175 = vpop.permute.xlu0 %2174
          %2178 = vset.pattern.permute.xlu0 0
          %2179 = vperm.xlu0 %2178, %v2157
          %v2180 = vpop.permute.xlu0 %2179
          %v2182 = vmul.f32 %v2165, %v2158
          %v2183 = vmul.f32 %v2170, %v2159
          %v2184 = vmul.f32 %v2175, %v2160
          %v2185 = vmul.f32 %v2180, %v2161
          %v2186 = vsub.f32 %v2150, %v2182
          %v2187 = vsub.f32 %v2151, %v2183
          %v2188 = vsub.f32 %v2152, %v2184
          %v2189 = vsub.f32 %v2153, %v2185
          %2190 = vst.msk [vmem:[%s258] sm:$0xff] %vm294, %v2186
          %2191 = vst.msk [vmem:[%s258 + $0x8] sm:$0xff] %vm294, %v2187
          %2192 = vst.msk [vmem:[%s258 + $0x10] sm:$0xff] %vm294, %v2188
          %2193 = vst.msk [vmem:[%s258 + $0x18] sm:$0xff] %vm294, %v2189
        $region52: #{tpu_custom_call.1} parent=39 // pred_fallthru
          _
        %s2194 = sand.u32 %s154, 1
        %s2195 = scalar_lea.sflag [#allocation6], %s2194
        %s2196 = sand.u32 %s154, 1
        %s2197 = smul.addr %s2196, 32
        %s2198 = scalar_lea.vmem [#allocation7], %s2197
        // Predicated region
        $region53: #{tpu_custom_call.1} parent=39 // pred_check
          %p2199 = pneg %p164
        $region54: #{tpu_custom_call.1} parent=39 // pred_check_branch
          %2201 = sbr.rel (%p2199) target = $region56
        $region55: #{tpu_custom_call.1} parent=39 // pred_region
          %s2203 = ssub.s32 512, 512
          %2204 = vsyncadd %s2195, %s2203
          %s2205 = smul.addr %s26, 4
          %s2206 = smul.addr %s2205, 128
          %s2207 = scalar_lea.hbm %s5, %s2206
          %s2208 = sshll.u32 %s2198, 4
          %s2209 = int_to_ptr.vmem [resolvable:$true] %s2208
          %2214 = dma.vmem_to_hbm [thread:$0]  %s2209, 512, %s2207, %s2195, 128, 128, 8
        $region56: #{tpu_custom_call.1} parent=39 // pred_fallthru
          _
      $region40: #{tpu_custom_call.1} parent=5 // pred_fallthru
        _
      %p2215 = scmp.le.s32.totalorder 2, %s17
      // Predicated region
      $region57: #{tpu_custom_call.1} parent=5 // pred_check
        %p2216 = pneg %p2215
      $region58: #{tpu_custom_call.1} parent=5 // pred_check_branch
        %2218 = sbr.rel (%p2216) target = $region60
      $region59: #{tpu_custom_call.1} parent=5 // pred_region
        %s2219 = ssub.s32 %s17, 2
        // Predicated region
        $region61: #{tpu_custom_call.1} parent=59 // pred_check
          %p2220 = pneg %p170
        $region62: #{tpu_custom_call.1} parent=59 // pred_check_branch
          %2222 = sbr.rel (%p2220) target = $region64
        $region63: #{tpu_custom_call.1} parent=59 // pred_region
          %s2223 = sand.u32 %s155, 1
          %s2224 = scalar_lea.sflag [#allocation6], %s2223
          %s2225 = sand.u32 %s155, 1
          %s2226 = smul.addr %s2225, 32
          %s2227 = scalar_lea.vmem [#allocation7], %s2226
          %2228 = dma.done %s2224, 512
        $region64: #{tpu_custom_call.1} parent=59 // pred_fallthru
          _
      $region60: #{tpu_custom_call.1} parent=5 // pred_fallthru
        _
    $region6: #{tpu_custom_call.1} parent=1 // loop_footer
      %s21 = sadd.s32 1, %s17
    $region7: #{tpu_custom_call.1} parent=1 // loop_footer_branch
      %16 = sbr.rel target = $region3
    $region8: #{tpu_custom_call.1} parent=1 // loop_exit
      _
    %2229 = vsyncpa [#allocation5], 1
    %s2230 = scalar_lea.sflag [#allocation5], 1
    %2231 = vsyncpa %s2230, 1
    %2232 = vsyncpa [#allocation6], 1
    %s2233 = scalar_lea.sflag [#allocation6], 1
    %2234 = vsyncpa %s2233, 1

</llo_original>
